<compile_context>
chip_gen: v7x
topology: tpu7x:2x2x1
jax: 0.10.0
libtpu: 0.0.40
codegen_flags: <defaults>
</compile_context>

<pallas_src>
import functools
import math

import jax
import jax.numpy as jnp
from jax.experimental import pallas as pl
from jax.experimental.pallas import tpu as pltpu


def _ceil_to(x, m):
    return ((x + m - 1) // m) * m


def _flash_attn_kernel(q_ref, k_ref, v_ref, vl_ref, o_ref,
                       m_sc, l_sc, acc_sc, *, scale, block_kv):
    kv_idx = pl.program_id(2)

    @pl.when(kv_idx == 0)
    def _init():
        m_sc[...] = jnp.full_like(m_sc, -jnp.inf)
        l_sc[...] = jnp.zeros_like(l_sc)
        acc_sc[...] = jnp.zeros_like(acc_sc)

    # (1, tq, d) x (1, tkv, d) -> (1, tq, tkv) scores, f32 accumulation on MXU.
    q = q_ref[...] * scale          # fold 1/sqrt(d) into Q (VPU; free under MXU bound)
    s = jnp.einsum("bqd,bkd->bqk", q, k_ref[...],
                   preferred_element_type=jnp.float32)

    # masked_softmax: kv positions >= valid_len get -1e6 (matches torch ref).
    col = kv_idx * block_kv + jax.lax.broadcasted_iota(jnp.int32, s.shape, 2)
    s = jnp.where(col < vl_ref[...], s, -1e6)

    # Online softmax update (all elementwise math in f32).
    m_prev = m_sc[...]
    m_new = jnp.maximum(m_prev, jnp.max(s, axis=-1, keepdims=True))
    alpha = jnp.exp(m_prev - m_new)
    p = jnp.exp(s - m_new)
    l_sc[...] = alpha * l_sc[...] + jnp.sum(p, axis=-1, keepdims=True)
    acc_sc[...] = alpha * acc_sc[...] + jnp.einsum(
        "bqk,bkd->bqd", p.astype(v_ref.dtype), v_ref[...],
        preferred_element_type=jnp.float32)
    m_sc[...] = m_new

    @pl.when(kv_idx == pl.num_programs(2) - 1)
    def _finalize():
        inv_l = pl.reciprocal(l_sc[...], approx=True)   # EUP slot, ~free
        o_ref[...] = (acc_sc[...] * inv_l).astype(o_ref.dtype)


def dot_product_attention(queries, keys, values, valid_lens=None,
                          *, block_q=128, block_kv=128, dropout_rate=0.0):
    """Scaled dot-product attention with masked softmax (flash-style Pallas)."""
    # TODO(synk): training-mode dropout on the attention weights is not
    # implemented (nn.Dropout is identity in eval), and the full [B,Sq,Skv]
    # attention_weights matrix is never materialized in the flash formulation.
    del dropout_rate

    B, Sq, d = queries.shape
    _, Skv, dk = keys.shape
    _, _, dv = values.shape
    assert keys.shape[0] == B and values.shape[0] == B and values.shape[1] == Skv
    assert dk == d

    scale = 1.0 / math.sqrt(d)

    # MXU/lane friendly tiles; shrink (8-aligned) for tiny inputs.
    # (v6e/v7x: block_q/block_kv of 256 also work well; 128 is safe everywhere.)
    tq = min(block_q, _ceil_to(Sq, 8))
    tkv = min(block_kv, _ceil_to(Skv, 8))
    Sq_p = _ceil_to(Sq, tq)
    Skv_p = _ceil_to(Skv, tkv)

    q_p = jnp.pad(queries, ((0, 0), (0, Sq_p - Sq), (0, 0)))
    k_p = jnp.pad(keys, ((0, 0), (0, Skv_p - Skv), (0, 0)))
    v_p = jnp.pad(values, ((0, 0), (0, Skv_p - Skv), (0, 0)))

    # Per-row valid lengths, [B, Sq_p, 1] int32.  None -> full length; also
    # clamp so Skv padding is always masked out.
    if valid_lens is None:
        vl = jnp.full((B, Sq), Skv, dtype=jnp.int32)
    else:
        vl = jnp.asarray(valid_lens).astype(jnp.int32)
        if vl.ndim == 1:
            vl = jnp.broadcast_to(vl[:, None], (B, Sq))
    vl = jnp.minimum(vl, Skv)
    vl = jnp.pad(vl, ((0, 0), (0, Sq_p - Sq)))[..., None]

    grid = (B, Sq_p // tq, Skv_p // tkv)
    kernel = functools.partial(_flash_attn_kernel, scale=scale, block_kv=tkv)

    itemsize = jnp.dtype(queries.dtype).itemsize
    cost = pl.CostEstimate(
        flops=2 * B * Sq_p * Skv_p * (d + dv),
        transcendentals=B * Sq_p * Skv_p,
        bytes_accessed=itemsize * B * (Sq_p * d + Skv_p * d + Skv_p * dv + Sq_p * dv),
    )

    out = pl.pallas_call(
        kernel,
        out_shape=jax.ShapeDtypeStruct((B, Sq_p, dv), values.dtype),
        grid_spec=pltpu.PrefetchScalarGridSpec(
            num_scalar_prefetch=0,
            grid=grid,
            in_specs=[
                pl.BlockSpec((1, tq, d), lambda b, qi, kj: (b, qi, 0)),
                pl.BlockSpec((1, tkv, d), lambda b, qi, kj: (b, kj, 0),
                             pipeline_mode=pl.Buffered(2)),
                pl.BlockSpec((1, tkv, dv), lambda b, qi, kj: (b, kj, 0),
                             pipeline_mode=pl.Buffered(2)),
                pl.BlockSpec((1, tq, 1), lambda b, qi, kj: (b, qi, 0)),
            ],
            out_specs=pl.BlockSpec((1, tq, dv), lambda b, qi, kj: (b, qi, 0)),
            scratch_shapes=[
                pltpu.VMEM((1, tq, 1), jnp.float32),    # running max  m
                pltpu.VMEM((1, tq, 1), jnp.float32),    # running sum  l
                pltpu.VMEM((1, tq, dv), jnp.float32),   # output accumulator
            ],
        ),
        compiler_params=pltpu.CompilerParams(
            dimension_semantics=("parallel", "parallel", "arbitrary"),
            vmem_limit_bytes=32 * 1024 * 1024,
        ),
        cost_estimate=cost,
    )(q_p, k_p, v_p, vl)

    return out[:, :Sq, :]


def _reference_attention(q, k, v, valid_lens):
    d = q.shape[-1]
    scores = jnp.einsum("bqd,bkd->bqk", q, k) / math.sqrt(d)
    if valid_lens is not None:
        mask = jnp.arange(k.shape[1])[None, None, :] < valid_lens[:, None, None]
        scores = jnp.where(mask, scores, -1e6)
    w = jax.nn.softmax(scores, axis=-1)
    return jnp.einsum("bqk,bkd->bqd", w, v)


if __name__ == "__main__":
    key = jax.random.PRNGKey(0)
    kq, kk, kvv = jax.random.split(key, 3)

    # Small but MXU/lane-aligned shapes: head_dim on the lane axis (128).
    B, Sq, Skv, D, DV = 2, 256, 256, 128, 128
    q = jax.random.normal(kq, (B, Sq, D), dtype=jnp.float32)
    k = jax.random.normal(kk, (B, Skv, D), dtype=jnp.float32)
    v = jax.random.normal(kvv, (B, Skv, DV), dtype=jnp.float32)
    valid_lens = jnp.array([100, 256], dtype=jnp.int32)

    # Masked path.
    out = jax.block_until_ready(dot_product_attention(q, k, v, valid_lens))
    ref = _reference_attention(q, k, v, valid_lens)
    assert out.shape == (B, Sq, DV) and out.dtype == v.dtype
    assert bool(jnp.allclose(out, ref, atol=2e-2, rtol=2e-2))

    # Unmasked path (valid_lens=None).
    out2 = jax.block_until_ready(dot_product_attention(q, k, v, None))
    ref2 = _reference_attention(q, k, v, None)
    assert bool(jnp.allclose(out2, ref2, atol=2e-2, rtol=2e-2))

    print("KERNEL_OK")
</pallas_src>

<mosaic_0001>
module attributes {stable_mosaic.version = 11 : i64} {
  func.func @_flash_attn_kernel(%arg0: i32, %arg1: i32, %arg2: i32, %arg3: memref<1x128x128xf32, #tpu.memory_space<vmem>>, %arg4: memref<1x128x128xf32, #tpu.memory_space<vmem>>, %arg5: memref<1x128x128xf32, #tpu.memory_space<vmem>>, %arg6: memref<1x128x1xi32, #tpu.memory_space<vmem>>, %arg7: memref<1x128x128xf32, #tpu.memory_space<vmem>>, %arg8: memref<1x128x1xf32, #tpu.memory_space<vmem>>, %arg9: memref<1x128x1xf32, #tpu.memory_space<vmem>>, %arg10: memref<1x128x128xf32, #tpu.memory_space<vmem>>) attributes {dimension_semantics = [#tpu.dimension_semantics<parallel>, #tpu.dimension_semantics<parallel>, #tpu.dimension_semantics<arbitrary>], iteration_bounds = array<i64: 2, 2, 2>, scalar_prefetch = 0 : i64, scratch_operands = 3 : i64, tpu.core_type = #tpu.core_type<tc>, window_params = [{transform_indices = @transform_0, window_bounds = array<i64: 1, 128, 128>}, {pipeline_mode = #tpu.pipeline_mode<double_buffered>, transform_indices = @transform_1, window_bounds = array<i64: 1, 128, 128>}, {pipeline_mode = #tpu.pipeline_mode<double_buffered>, transform_indices = @transform_2, window_bounds = array<i64: 1, 128, 128>}, {transform_indices = @transform_3, window_bounds = array<i64: 1, 128, 1>}, {transform_indices = @transform_4, window_bounds = array<i64: 1, 128, 128>}]} {
    %c0_i32 = arith.constant 0 : i32
    %0 = arith.cmpi eq, %arg2, %c0_i32 : i32
    %1 = arith.extui %0 : i1 to i32
    %c0_i32_0 = arith.constant 0 : i32
    %2 = arith.cmpi ne, %1, %c0_i32_0 : i32
    scf.if %2 {
      %cst_36 = arith.constant 0xFF800000 : f32
      %43 = vector.broadcast %cst_36 : f32 to vector<1x128x1xf32>
      %c0_37 = arith.constant 0 : index
      %c0_38 = arith.constant 0 : index
      %c0_39 = arith.constant 0 : index
      %44 = vector.load %arg8[%c0_37, %c0_38, %c0_39] : memref<1x128x1xf32, #tpu.memory_space<vmem>>, vector<1x128x1xf32>
      tpu.vector_store %arg8[%c0_37, %c0_38, %c0_39], %43 {strides = array<i32>} : memref<1x128x1xf32, #tpu.memory_space<vmem>>, vector<1x128x1xf32>,
      %cst_40 = arith.constant 0.000000e+00 : f32
      %45 = vector.broadcast %cst_40 : f32 to vector<1x128x1xf32>
      %c0_41 = arith.constant 0 : index
      %c0_42 = arith.constant 0 : index
      %c0_43 = arith.constant 0 : index
      %46 = vector.load %arg9[%c0_41, %c0_42, %c0_43] : memref<1x128x1xf32, #tpu.memory_space<vmem>>, vector<1x128x1xf32>
      tpu.vector_store %arg9[%c0_41, %c0_42, %c0_43], %45 {strides = array<i32>} : memref<1x128x1xf32, #tpu.memory_space<vmem>>, vector<1x128x1xf32>,
      %cst_44 = arith.constant 0.000000e+00 : f32
      %47 = vector.broadcast %cst_44 : f32 to vector<1x128x128xf32>
      %c0_45 = arith.constant 0 : index
      %c0_46 = arith.constant 0 : index
      %c0_47 = arith.constant 0 : index
      %48 = vector.load %arg10[%c0_45, %c0_46, %c0_47] : memref<1x128x128xf32, #tpu.memory_space<vmem>>, vector<1x128x128xf32>
      tpu.vector_store %arg10[%c0_45, %c0_46, %c0_47], %47 {strides = array<i32>} : memref<1x128x128xf32, #tpu.memory_space<vmem>>, vector<1x128x128xf32>,
    } else {
    }
    %c0 = arith.constant 0 : index
    %c0_1 = arith.constant 0 : index
    %c0_2 = arith.constant 0 : index
    %3 = vector.load %arg3[%c0, %c0_1, %c0_2] : memref<1x128x128xf32, #tpu.memory_space<vmem>>, vector<1x128x128xf32>
    %cst = arith.constant 0.0883883461 : f32
    %4 = vector.broadcast %cst : f32 to vector<1x128x128xf32>
    %5 = arith.mulf %3, %4 : vector<1x128x128xf32>
    %c0_3 = arith.constant 0 : index
    %c0_4 = arith.constant 0 : index
    %c0_5 = arith.constant 0 : index
    %6 = vector.load %arg4[%c0_3, %c0_4, %c0_5] : memref<1x128x128xf32, #tpu.memory_space<vmem>>, vector<1x128x128xf32>
    "tpu.trace_start"() <{level = 10 : i32, message = "bqd,bkd->bqk"}> : () -> ()
    %cst_6 = arith.constant dense<0.000000e+00> : vector<1x128x128xf32>
    %7 = tpu.matmul %5, %6, %cst_6 {dimension_numbers = #tpu.dot_dimension_numbers<[2], [2], [1], [1], [0, 0, 0, 1, 1, 1], [0], [0]>} : vector<1x128x128xf32>, vector<1x128x128xf32>, vector<1x128x128xf32> -> vector<1x128x128xf32>
    "tpu.trace_stop"() : () -> ()
    %c128_i32 = arith.constant 128 : i32
    %8 = arith.muli %arg2, %c128_i32 : i32
    %9 = tpu.iota {dimensions = array<i32: 2>} : vector<1x128x128xi32>
    %10 = vector.broadcast %8 : i32 to vector<1x128x128xi32>
    %11 = arith.addi %10, %9 : vector<1x128x128xi32>
    %c0_7 = arith.constant 0 : index
    %c0_8 = arith.constant 0 : index
    %c0_9 = arith.constant 0 : index
    %12 = vector.load %arg6[%c0_7, %c0_8, %c0_9] : memref<1x128x1xi32, #tpu.memory_space<vmem>>, vector<1x128x1xi32>
    %13 = vector.broadcast %12 : vector<1x128x1xi32> to vector<1x128x128xi32>
    %14 = arith.cmpi slt, %11, %13 : vector<1x128x128xi32>
    %cst_10 = arith.constant -1.000000e+06 : f32
    %15 = vector.broadcast %cst_10 : f32 to vector<1x128x128xf32>
    %16 = arith.select %14, %7, %15 : vector<1x128x128xi1>, vector<1x128x128xf32>
    %c0_11 = arith.constant 0 : index
    %c0_12 = arith.constant 0 : index
    %c0_13 = arith.constant 0 : index
    %17 = vector.load %arg8[%c0_11, %c0_12, %c0_13] : memref<1x128x1xf32, #tpu.memory_space<vmem>>, vector<1x128x1xf32>
    %cst_14 = arith.constant dense<0xFF800000> : vector<1x128xf32>
    %18 = vector.multi_reduction <maximumf>, %16, %cst_14 [2] : vector<1x128x128xf32> to vector<1x128xf32>
    %19 = vector.shape_cast %18 : vector<1x128xf32> to vector<1x128x1xf32>
    %20 = arith.maximumf %17, %19 : vector<1x128x1xf32>
    %21 = arith.subf %17, %20 : vector<1x128x1xf32>
    %22 = math.exp %21 : vector<1x128x1xf32>
    %23 = vector.broadcast %20 : vector<1x128x1xf32> to vector<1x128x128xf32>
    %24 = arith.subf %16, %23 : vector<1x128x128xf32>
    %25 = math.exp %24 : vector<1x128x128xf32>
    %c0_15 = arith.constant 0 : index
    %c0_16 = arith.constant 0 : index
    %c0_17 = arith.constant 0 : index
    %26 = vector.load %arg9[%c0_15, %c0_16, %c0_17] : memref<1x128x1xf32, #tpu.memory_space<vmem>>, vector<1x128x1xf32>
    %27 = arith.mulf %22, %26 : vector<1x128x1xf32>
    %cst_18 = arith.constant dense<0.000000e+00> : vector<1x128xf32>
    %28 = vector.multi_reduction <add>, %25, %cst_18 [2] : vector<1x128x128xf32> to vector<1x128xf32>
    %29 = vector.shape_cast %28 : vector<1x128xf32> to vector<1x128x1xf32>
    %30 = arith.addf %27, %29 : vector<1x128x1xf32>
    %c0_19 = arith.constant 0 : index
    %c0_20 = arith.constant 0 : index
    %c0_21 = arith.constant 0 : index
    %31 = vector.load %arg9[%c0_19, %c0_20, %c0_21] : memref<1x128x1xf32, #tpu.memory_space<vmem>>, vector<1x128x1xf32>
    tpu.vector_store %arg9[%c0_19, %c0_20, %c0_21], %30 {strides = array<i32>} : memref<1x128x1xf32, #tpu.memory_space<vmem>>, vector<1x128x1xf32>,
    %c0_22 = arith.constant 0 : index
    %c0_23 = arith.constant 0 : index
    %c0_24 = arith.constant 0 : index
    %32 = vector.load %arg10[%c0_22, %c0_23, %c0_24] : memref<1x128x128xf32, #tpu.memory_space<vmem>>, vector<1x128x128xf32>
    %33 = vector.broadcast %22 : vector<1x128x1xf32> to vector<1x128x128xf32>
    %34 = arith.mulf %33, %32 : vector<1x128x128xf32>
    %c0_25 = arith.constant 0 : index
    %c0_26 = arith.constant 0 : index
    %c0_27 = arith.constant 0 : index
    %35 = vector.load %arg5[%c0_25, %c0_26, %c0_27] : memref<1x128x128xf32, #tpu.memory_space<vmem>>, vector<1x128x128xf32>
    "tpu.trace_start"() <{level = 10 : i32, message = "bqk,bkd->bqd"}> : () -> ()
    %cst_28 = arith.constant dense<0.000000e+00> : vector<1x128x128xf32>
    %36 = tpu.matmul %25, %35, %cst_28 {dimension_numbers = #tpu.dot_dimension_numbers<[2], [1], [1], [2], [0, 0, 0, 1, 1, 2], [0], [0]>} : vector<1x128x128xf32>, vector<1x128x128xf32>, vector<1x128x128xf32> -> vector<1x128x128xf32>
    "tpu.trace_stop"() : () -> ()
    %37 = arith.addf %34, %36 : vector<1x128x128xf32>
    %c0_29 = arith.constant 0 : index
    %c0_30 = arith.constant 0 : index
    %c0_31 = arith.constant 0 : index
    %38 = vector.load %arg10[%c0_29, %c0_30, %c0_31] : memref<1x128x128xf32, #tpu.memory_space<vmem>>, vector<1x128x128xf32>
    tpu.vector_store %arg10[%c0_29, %c0_30, %c0_31], %37 {strides = array<i32>} : memref<1x128x128xf32, #tpu.memory_space<vmem>>, vector<1x128x128xf32>,
    %c0_32 = arith.constant 0 : index
    %c0_33 = arith.constant 0 : index
    %c0_34 = arith.constant 0 : index
    %39 = vector.load %arg8[%c0_32, %c0_33, %c0_34] : memref<1x128x1xf32, #tpu.memory_space<vmem>>, vector<1x128x1xf32>
    tpu.vector_store %arg8[%c0_32, %c0_33, %c0_34], %20 {strides = array<i32>} : memref<1x128x1xf32, #tpu.memory_space<vmem>>, vector<1x128x1xf32>,
    %c1_i32 = arith.constant 1 : i32
    %40 = arith.cmpi eq, %arg2, %c1_i32 : i32
    %41 = arith.extui %40 : i1 to i32
    %c0_i32_35 = arith.constant 0 : i32
    %42 = arith.cmpi ne, %41, %c0_i32_35 : i32
    scf.if %42 {
      %c0_36 = arith.constant 0 : index
      %c0_37 = arith.constant 0 : index
      %c0_38 = arith.constant 0 : index
      %43 = vector.load %arg9[%c0_36, %c0_37, %c0_38] : memref<1x128x1xf32, #tpu.memory_space<vmem>>, vector<1x128x1xf32>
      %44 = tpu.reciprocal %43 {approx = true} : vector<1x128x1xf32> -> vector<1x128x1xf32>
      %c0_39 = arith.constant 0 : index
      %c0_40 = arith.constant 0 : index
      %c0_41 = arith.constant 0 : index
      %45 = vector.load %arg10[%c0_39, %c0_40, %c0_41] : memref<1x128x128xf32, #tpu.memory_space<vmem>>, vector<1x128x128xf32>
      %46 = vector.broadcast %44 : vector<1x128x1xf32> to vector<1x128x128xf32>
      %47 = arith.mulf %45, %46 : vector<1x128x128xf32>
      %c0_42 = arith.constant 0 : index
      %c0_43 = arith.constant 0 : index
      %c0_44 = arith.constant 0 : index
      %48 = vector.load %arg7[%c0_42, %c0_43, %c0_44] : memref<1x128x128xf32, #tpu.memory_space<vmem>>, vector<1x128x128xf32>
      tpu.vector_store %arg7[%c0_42, %c0_43, %c0_44], %47 {strides = array<i32>} : memref<1x128x128xf32, #tpu.memory_space<vmem>>, vector<1x128x128xf32>,
    } else {
    }
    return
  }
  func.func @transform_0(%arg0: i32, %arg1: i32, %arg2: i32) -> (i32, i32, i32) {
    %c0_i32 = arith.constant 0 : i32
    %c0_i32_0 = arith.constant 0 : i32
    return %arg0, %arg1, %c0_i32 : i32, i32, i32
  }
  func.func @transform_1(%arg0: i32, %arg1: i32, %arg2: i32) -> (i32, i32, i32) {
    %c0_i32 = arith.constant 0 : i32
    %c0_i32_0 = arith.constant 0 : i32
    return %arg0, %arg2, %c0_i32 : i32, i32, i32
  }
  func.func @transform_2(%arg0: i32, %arg1: i32, %arg2: i32) -> (i32, i32, i32) {
    %c0_i32 = arith.constant 0 : i32
    %c0_i32_0 = arith.constant 0 : i32
    return %arg0, %arg2, %c0_i32 : i32, i32, i32
  }
  func.func @transform_3(%arg0: i32, %arg1: i32, %arg2: i32) -> (i32, i32, i32) {
    %c0_i32 = arith.constant 0 : i32
    %c0_i32_0 = arith.constant 0 : i32
    return %arg0, %arg1, %c0_i32 : i32, i32, i32
  }
  func.func @transform_4(%arg0: i32, %arg1: i32, %arg2: i32) -> (i32, i32, i32) {
    %c0_i32 = arith.constant 0 : i32
    %c0_i32_0 = arith.constant 0 : i32
    return %arg0, %arg1, %c0_i32 : i32, i32, i32
  }
}

</mosaic_0001>

<llo_original>
// kernel: tpu_custom_call.1
$region0: #{tpu_custom_call.1}
  #allocation0 [shape = 'u32[]', space=smem, size = 0x4, offset = 0x4, fixed_abs, tag = 'smem constant byte address 0x4 - core index']
  #allocation1 [shape = 'u32[144,128]{1,0:T(1,128)}', space=vmem, size = 0x12000, scoped, tag = 'internal scratch']
  #allocation2 [shape = 'f32[1,128,1]{2,1,0:T(8,128)}', space=vmem, size = 0x10000, scoped, tag = 'scratch operand']
  #allocation3 [shape = 'f32[1,128,1]{2,1,0:T(8,128)}', space=vmem, size = 0x10000, scoped, tag = 'scratch operand']
  #allocation4 [shape = 'f32[1,128,128]{2,1,0:T(8,128)}', space=vmem, size = 0x10000, scoped, tag = 'scratch operand']
  %s0 = inlined_call_operand.vmem [shape: f32[2,256,128], index: 0, kind: input, shape index: {}]
  %s1 = inlined_call_operand.hbm [shape: f32[2,256,128], index: 1, kind: input, shape index: {}]
  %s2 = inlined_call_operand.hbm [shape: f32[2,256,128], index: 2, kind: input, shape index: {}]
  %s3 = inlined_call_operand.vmem [shape: s32[2,256,1], index: 3, kind: input, shape index: {}]
  %s4 = inlined_call_operand.hbm [shape: f32[2,256,128], index: 4, kind: output, shape index: {}]
  %s5 = sld [smem:[#allocation0]]
  $region65: #{tpu_custom_call.1} parent=0
    _
  %s7 = ssub.s32 1, %s5
  %s8 = scalar_select 0, %s7, %s5
  $region1: #{tpu_custom_call.1} parent=0
    #allocation5 [shape = 'u8[131072]{0}', space=vmem, size = 0x20000, scoped, tag = 'input window, operand 1']
    #allocation6 [shape = 's32[2]{0}', space=sflag, size = 0x8, scoped, tag = 'scoped memory for tpu_custom_call.1']
    #allocation7 [shape = 's32[2]{0}', space=sflag, size = 0x8, scoped, tag = 'scoped memory for tpu_custom_call.1']
    #allocation8 [shape = 'u8[131072]{0}', space=vmem, size = 0x20000, scoped, tag = 'input window, operand 2']
    #allocation9 [shape = 's32[2]{0}', space=sflag, size = 0x8, scoped, tag = 'scoped memory for tpu_custom_call.1']
    #allocation10 [shape = 'u8[131072]{0}', space=vmem, size = 0x20000, scoped, tag = 'output window, operand 0']
    %9 = vsyncpa [#allocation6], 0
    %s10 = scalar_lea.sflag [#allocation6], 1
    %11 = vsyncpa %s10, 0
    %12 = vsyncpa [#allocation9], 0
    %s13 = scalar_lea.sflag [#allocation9], 1
    %14 = vsyncpa %s13, 0
    %15 = vsyncpa [#allocation7], 0
    %s16 = scalar_lea.sflag [#allocation7], 1
    %17 = vsyncpa %s16, 0
    loop: start=0, step=1, limit=10
    $region2: #{tpu_custom_call.1} parent=1 // loop_pre_header
      _
    $region3: #{tpu_custom_call.1} parent=1 // loop_header
      %s19 = sphi 0, %s23
      %p20 = scmp.ge.s32.totalorder %s19, 10
      %s26 = sphi 0, %s45
      %s27 = sphi 0, %s41
      %s28 = sphi 0, %s37
      %s29 = sphi 0, %s26
      %s30 = sphi 0, %s27
      %s31 = sphi 0, %s28
      %s32 = sphi 0, %s29
      %s33 = sphi 0, %s30
      %s34 = sphi 0, %s31
      %s50 = sphi 0, %s52
      %s53 = sphi 0, %s50
      %s54 = sphi 0, %s53
      %s70 = sphi 0, %s54
      %s78 = sphi 0, %s80
      %s81 = sphi 0, %s78
      %s82 = sphi 0, %s81
      %s98 = sphi 0, %s82
      %s106 = sphi 0, %s108
      %s109 = sphi 0, %s106
      %s110 = sphi 0, %s109
      %s126 = sphi 0, %s110
      %s134 = sphi 0, %s136
      %s137 = sphi 0, %s134
      %s138 = sphi 0, %s137
      %s154 = sphi 0, %s138
      %s162 = sphi 0, %s164
      %s165 = sphi 0, %s162
      %s166 = sphi 0, %s165
      %s182 = sphi 0, %s166
    $region4: #{tpu_custom_call.1} parent=1 // loop_header_branch
      %22 = sbr.rel (%p20) target = $region8
    $region5: #{tpu_custom_call.1} parent=1 // loop_body
      %s24 = ssub.s32 %s19, 1
      %s25 = ssub.s32 %s19, 2
      %s35 = sadd.s32 1, %s28
      %p36 = scmp.ge.s32.totalorder %s35, 2
      %s37 = scalar_select %p36, 0, %s35
      %s38 = sadd.s32 1, %s27
      %s39 = scalar_select %p36, %s38, %s27
      %p40 = scmp.ge.s32.totalorder %s39, 2
      %s41 = scalar_select %p40, 0, %s39
      %s42 = sadd.s32 1, %s26
      %s43 = scalar_select %p40, %s42, %s26
      %p44 = scmp.ge.s32.totalorder %s43, 2
      %s45 = scalar_select %p44, 0, %s43
      %s46 = ssub.s32 %s26, %s45
      %s47 = ssub.s32 %s27, %s41
      %s48 = sor.u32 %s46, %s47
      %p49 = scmp.eq.s32.totalorder %s48, 0
      %s51 = sadd.s32 %s50, 1
      %s52 = scalar_select %p49, %s50, %s51
      %p55 = pneg %p49
      %p56 = scmp.eq.s32.totalorder %s19, 7
      %p57 = por %p55, %p56
      %p58 = scmp.ne.s32.totalorder %s50, %s53
      %p59 = scmp.eq.s32.totalorder %s19, 0
      %p60 = por %p58, %p59
      %p61 = scmp.ne.s32.totalorder %s50, %s53
      %p62 = scmp.eq.s32.totalorder %s24, 7
      %p63 = por %p61, %p62
      %p64 = scmp.ne.s32.totalorder %s53, %s54
      %p65 = scmp.eq.s32.totalorder %s24, 0
      %p66 = por %p64, %p65
      %p67 = scmp.ne.s32.totalorder %s53, %s54
      %p68 = scmp.eq.s32.totalorder %s25, 7
      %p69 = por %p67, %p68
      %p71 = scmp.ne.s32.totalorder %s54, %s70
      %p72 = scmp.eq.s32.totalorder %s25, 0
      %p73 = por %p71, %p72
      %s74 = ssub.s32 %s26, %s45
      %s75 = ssub.s32 %s28, %s37
      %s76 = sor.u32 %s74, %s75
      %p77 = scmp.eq.s32.totalorder %s76, 0
      %s79 = sadd.s32 %s78, 1
      %s80 = scalar_select %p77, %s78, %s79
      %p83 = pneg %p77
      %p84 = scmp.eq.s32.totalorder %s19, 7
      %p85 = por %p83, %p84
      %p86 = scmp.ne.s32.totalorder %s78, %s81
      %p87 = scmp.eq.s32.totalorder %s19, 0
      %p88 = por %p86, %p87
      %p89 = scmp.ne.s32.totalorder %s78, %s81
      %p90 = scmp.eq.s32.totalorder %s24, 7
      %p91 = por %p89, %p90
      %p92 = scmp.ne.s32.totalorder %s81, %s82
      %p93 = scmp.eq.s32.totalorder %s24, 0
      %p94 = por %p92, %p93
      %p95 = scmp.ne.s32.totalorder %s81, %s82
      %p96 = scmp.eq.s32.totalorder %s25, 7
      %p97 = por %p95, %p96
      %p99 = scmp.ne.s32.totalorder %s82, %s98
      %p100 = scmp.eq.s32.totalorder %s25, 0
      %p101 = por %p99, %p100
      %s102 = ssub.s32 %s26, %s45
      %s103 = ssub.s32 %s28, %s37
      %s104 = sor.u32 %s102, %s103
      %p105 = scmp.eq.s32.totalorder %s104, 0
      %s107 = sadd.s32 %s106, 1
      %s108 = scalar_select %p105, %s106, %s107
      %p111 = pneg %p105
      %p112 = scmp.eq.s32.totalorder %s19, 7
      %p113 = por %p111, %p112
      %p114 = scmp.ne.s32.totalorder %s106, %s109
      %p115 = scmp.eq.s32.totalorder %s19, 0
      %p116 = por %p114, %p115
      %p117 = scmp.ne.s32.totalorder %s106, %s109
      %p118 = scmp.eq.s32.totalorder %s24, 7
      %p119 = por %p117, %p118
      %p120 = scmp.ne.s32.totalorder %s109, %s110
      %p121 = scmp.eq.s32.totalorder %s24, 0
      %p122 = por %p120, %p121
      %p123 = scmp.ne.s32.totalorder %s109, %s110
      %p124 = scmp.eq.s32.totalorder %s25, 7
      %p125 = por %p123, %p124
      %p127 = scmp.ne.s32.totalorder %s110, %s126
      %p128 = scmp.eq.s32.totalorder %s25, 0
      %p129 = por %p127, %p128
      %s130 = ssub.s32 %s26, %s45
      %s131 = ssub.s32 %s27, %s41
      %s132 = sor.u32 %s130, %s131
      %p133 = scmp.eq.s32.totalorder %s132, 0
      %s135 = sadd.s32 %s134, 1
      %s136 = scalar_select %p133, %s134, %s135
      %p139 = pneg %p133
      %p140 = scmp.eq.s32.totalorder %s19, 7
      %p141 = por %p139, %p140
      %p142 = scmp.ne.s32.totalorder %s134, %s137
      %p143 = scmp.eq.s32.totalorder %s19, 0
      %p144 = por %p142, %p143
      %p145 = scmp.ne.s32.totalorder %s134, %s137
      %p146 = scmp.eq.s32.totalorder %s24, 7
      %p147 = por %p145, %p146
      %p148 = scmp.ne.s32.totalorder %s137, %s138
      %p149 = scmp.eq.s32.totalorder %s24, 0
      %p150 = por %p148, %p149
      %p151 = scmp.ne.s32.totalorder %s137, %s138
      %p152 = scmp.eq.s32.totalorder %s25, 7
      %p153 = por %p151, %p152
      %p155 = scmp.ne.s32.totalorder %s138, %s154
      %p156 = scmp.eq.s32.totalorder %s25, 0
      %p157 = por %p155, %p156
      %s158 = ssub.s32 %s26, %s45
      %s159 = ssub.s32 %s27, %s41
      %s160 = sor.u32 %s158, %s159
      %p161 = scmp.eq.s32.totalorder %s160, 0
      %s163 = sadd.s32 %s162, 1
      %s164 = scalar_select %p161, %s162, %s163
      %p167 = pneg %p161
      %p168 = scmp.eq.s32.totalorder %s19, 7
      %p169 = por %p167, %p168
      %p170 = scmp.ne.s32.totalorder %s162, %s165
      %p171 = scmp.eq.s32.totalorder %s19, 0
      %p172 = por %p170, %p171
      %p173 = scmp.ne.s32.totalorder %s162, %s165
      %p174 = scmp.eq.s32.totalorder %s24, 7
      %p175 = por %p173, %p174
      %p176 = scmp.ne.s32.totalorder %s165, %s166
      %p177 = scmp.eq.s32.totalorder %s24, 0
      %p178 = por %p176, %p177
      %p179 = scmp.ne.s32.totalorder %s165, %s166
      %p180 = scmp.eq.s32.totalorder %s25, 7
      %p181 = por %p179, %p180
      %p183 = scmp.ne.s32.totalorder %s166, %s182
      %p184 = scmp.eq.s32.totalorder %s25, 0
      %p185 = por %p183, %p184
      %p186 = scmp.le.s32.totalorder 1, %s19
      %p187 = scmp.lt.s32.totalorder %s19, 9
      %p188 = pnand %p186, %p187
      %p189 = pneg %p188
      // Predicated region
      $region9: #{tpu_custom_call.1} parent=5 // pred_check
        _
      $region10: #{tpu_custom_call.1} parent=5 // pred_check_branch
        %191 = sbr.rel (%p188) target = $region12
      $region11: #{tpu_custom_call.1} parent=5 // pred_region
        %s192 = ssub.s32 %s19, 1
      $region12: #{tpu_custom_call.1} parent=5 // pred_fallthru
        _
      %p193 = scmp.lt.s32.totalorder %s19, 8
      // Predicated region
      $region13: #{tpu_custom_call.1} parent=5 // pred_check
        %p194 = pneg %p193
      $region14: #{tpu_custom_call.1} parent=5 // pred_check_branch
        %196 = sbr.rel (%p194) target = $region16
      $region15: #{tpu_custom_call.1} parent=5 // pred_region
        // Predicated region
        $region17: #{tpu_custom_call.1} parent=15 // pred_check
          %p197 = pneg %p60
        $region18: #{tpu_custom_call.1} parent=15 // pred_check_branch
          %199 = sbr.rel (%p197) target = $region20
        $region19: #{tpu_custom_call.1} parent=15 // pred_region
          %s200 = smul.u32 16, %s27
          %p201 = scmp.lt.s32.totalorder %s26, 1
          %s202 = scalar_select %p201, %s26, 1
          %p203 = scmp.lt.s32.totalorder %s200, 31
          %s204 = scalar_select %p203, %s200, 31
          %s205 = smul.addr %s202, 32
          %s206 = sadd.s32 %s204, %s205
          %s207 = smul.addr %s206, 8
          %s208 = scalar_lea.vmem %s0, %s207
          %s209 = smul.u32 16, %s27
        $region20: #{tpu_custom_call.1} parent=15 // pred_fallthru
          _
        // Predicated region
        $region21: #{tpu_custom_call.1} parent=15 // pred_check
          %p210 = pneg %p88
        $region22: #{tpu_custom_call.1} parent=15 // pred_check_branch
          %212 = sbr.rel (%p210) target = $region24
        $region23: #{tpu_custom_call.1} parent=15 // pred_region
          %s213 = sand.u32 %s78, 1
          %s214 = scalar_lea.sflag [#allocation6], %s213
          %s215 = sand.u32 %s78, 1
          %s216 = smul.addr %s215, 128
          %s217 = scalar_lea.vmem [#allocation5], %s216
          %s218 = smul.u32 16, %s28
          %s220 = ssub.s32 2048, 2048
          %221 = vsyncadd %s214, %s220
          %s222 = smul.addr %s26, 32
          %s223 = sadd.s32 %s218, %s222
          %s224 = smul.addr %s223, 128
          %s225 = scalar_lea.hbm %s1, %s224
          %s226 = sshll.u32 %s217, 4
          %s227 = int_to_ptr.vmem [resolvable:$true] %s226
          %232 = dma.hbm_to_vmem [thread:$0]  %s225, 2048, %s227, %s214, 128, 128, 8
        $region24: #{tpu_custom_call.1} parent=15 // pred_fallthru
          _
        // Predicated region
        $region25: #{tpu_custom_call.1} parent=15 // pred_check
          %p233 = pneg %p116
        $region26: #{tpu_custom_call.1} parent=15 // pred_check_branch
          %235 = sbr.rel (%p233) target = $region28
        $region27: #{tpu_custom_call.1} parent=15 // pred_region
          %s236 = sand.u32 %s106, 1
          %s237 = scalar_lea.sflag [#allocation9], %s236
          %s238 = sand.u32 %s106, 1
          %s239 = smul.addr %s238, 128
          %s240 = scalar_lea.vmem [#allocation8], %s239
          %s241 = smul.u32 16, %s28
          %s243 = ssub.s32 2048, 2048
          %244 = vsyncadd %s237, %s243
          %s245 = smul.addr %s26, 32
          %s246 = sadd.s32 %s241, %s245
          %s247 = smul.addr %s246, 128
          %s248 = scalar_lea.hbm %s2, %s247
          %s249 = sshll.u32 %s240, 4
          %s250 = int_to_ptr.vmem [resolvable:$true] %s249
          %255 = dma.hbm_to_vmem [thread:$0]  %s248, 2048, %s250, %s237, 128, 128, 8
        $region28: #{tpu_custom_call.1} parent=15 // pred_fallthru
          _
        // Predicated region
        $region29: #{tpu_custom_call.1} parent=15 // pred_check
          %p256 = pneg %p144
        $region30: #{tpu_custom_call.1} parent=15 // pred_check_branch
          %258 = sbr.rel (%p256) target = $region32
        $region31: #{tpu_custom_call.1} parent=15 // pred_region
          %s259 = smul.u32 16, %s27
          %p260 = scmp.lt.s32.totalorder %s26, 1
          %s261 = scalar_select %p260, %s26, 1
          %p262 = scmp.lt.s32.totalorder %s259, 31
          %s263 = scalar_select %p262, %s259, 31
          %s264 = smul.addr %s261, 32
          %s265 = sadd.s32 %s263, %s264
          %s266 = smul.addr %s265, 8
          %s267 = scalar_lea.vmem %s3, %s266
          %s268 = smul.u32 16, %s27
        $region32: #{tpu_custom_call.1} parent=15 // pred_fallthru
          _
      $region16: #{tpu_custom_call.1} parent=5 // pred_fallthru
        _
      %p269 = scmp.le.s32.totalorder 1, %s19
      %p270 = scmp.lt.s32.totalorder %s19, 9
      %p271 = pnand %p269, %p270
      %p272 = pneg %p271
      // Predicated region
      $region33: #{tpu_custom_call.1} parent=5 // pred_check
        _
      $region34: #{tpu_custom_call.1} parent=5 // pred_check_branch
        %274 = sbr.rel (%p271) target = $region36
      $region35: #{tpu_custom_call.1} parent=5 // pred_region
        %s275 = ssub.s32 %s19, 1
        %s276 = sand.u32 %s81, 1
        %s277 = scalar_lea.sflag [#allocation6], %s276
        %s278 = sand.u32 %s81, 1
        %s279 = smul.addr %s278, 128
        %s280 = scalar_lea.vmem [#allocation5], %s279
        // Predicated region
        $region37: #{tpu_custom_call.1} parent=35 // pred_check
          %p281 = pneg %p94
        $region38: #{tpu_custom_call.1} parent=35 // pred_check_branch
          %283 = sbr.rel (%p281) target = $region40
        $region39: #{tpu_custom_call.1} parent=35 // pred_region
          %284 = dma.done %s277, 2048
        $region40: #{tpu_custom_call.1} parent=35 // pred_fallthru
          _
        %s285 = sand.u32 %s109, 1
        %s286 = scalar_lea.sflag [#allocation9], %s285
        %s287 = sand.u32 %s109, 1
        %s288 = smul.addr %s287, 128
        %s289 = scalar_lea.vmem [#allocation8], %s288
        // Predicated region
        $region41: #{tpu_custom_call.1} parent=35 // pred_check
          %p290 = pneg %p122
        $region42: #{tpu_custom_call.1} parent=35 // pred_check_branch
          %292 = sbr.rel (%p290) target = $region44
        $region43: #{tpu_custom_call.1} parent=35 // pred_region
          %293 = dma.done %s286, 2048
        $region44: #{tpu_custom_call.1} parent=35 // pred_fallthru
          _
        %s294 = smul.u32 16, %s30
        %p295 = scmp.lt.s32.totalorder %s29, 1
        %s296 = scalar_select %p295, %s29, 1
        %p297 = scmp.lt.s32.totalorder %s294, 31
        %s298 = scalar_select %p297, %s294, 31
        %s299 = smul.addr %s296, 32
        %s300 = sadd.s32 %s298, %s299
        %s301 = smul.addr %s300, 8
        %s302 = scalar_lea.vmem %s0, %s301
        %p303 = pneg %p66
        %p304 = pneg %p63
        %s305 = sand.u32 %s81, 1
        %s306 = scalar_lea.sflag [#allocation6], %s305
        %s307 = sand.u32 %s81, 1
        %s308 = smul.addr %s307, 128
        %s309 = scalar_lea.vmem [#allocation5], %s308
        %p310 = pneg %p94
        %p311 = pneg %p91
        %s312 = sand.u32 %s109, 1
        %s313 = scalar_lea.sflag [#allocation9], %s312
        %s314 = sand.u32 %s109, 1
        %s315 = smul.addr %s314, 128
        %s316 = scalar_lea.vmem [#allocation8], %s315
        %p317 = pneg %p122
        %p318 = pneg %p119
        %s319 = smul.u32 16, %s30
        %p320 = scmp.lt.s32.totalorder %s29, 1
        %s321 = scalar_select %p320, %s29, 1
        %p322 = scmp.lt.s32.totalorder %s319, 31
        %s323 = scalar_select %p322, %s319, 31
        %s324 = smul.addr %s321, 32
        %s325 = sadd.s32 %s323, %s324
        %s326 = smul.addr %s325, 8
        %s327 = scalar_lea.vmem %s3, %s326
        %p328 = pneg %p150
        %p329 = pneg %p147
        %p330 = pneg %p178
        %p331 = pneg %p175
        %s332 = sand.u32 %s165, 1
        %s333 = scalar_lea.sflag [#allocation7], %s332
        %s334 = sand.u32 %s165, 1
        %s335 = smul.addr %s334, 128
        %s336 = scalar_lea.vmem [#allocation10], %s335
        %s337 = smul.u32 16, %s30
        %p338 = scmp.lt.s32.totalorder %s29, 1
        %s339 = scalar_select %p338, %s29, 1
        %p340 = scmp.lt.s32.totalorder %s337, 31
        %s341 = scalar_select %p340, %s337, 31
        %s342 = smul.addr %s339, 32
        %s343 = sadd.s32 %s341, %s342
        %s344 = smul.addr %s343, 8
        %s345 = scalar_lea.vmem %s0, %s344
        %s346 = smul.u32 16, %s30
        %s347 = smul.u32 16, %s31
        %s348 = smul.u32 16, %s31
        %s349 = smul.u32 16, %s30
        %p350 = scmp.lt.s32.totalorder %s29, 1
        %s351 = scalar_select %p350, %s29, 1
        %p352 = scmp.lt.s32.totalorder %s349, 31
        %s353 = scalar_select %p352, %s349, 31
        %s354 = smul.addr %s351, 32
        %s355 = sadd.s32 %s353, %s354
        %s356 = smul.addr %s355, 8
        %s357 = scalar_lea.vmem %s3, %s356
        %s358 = smul.u32 16, %s30
        %s359 = smul.u32 16, %s30
        %p360 = scmp.eq.s32.totalorder %s31, 0
        // Predicated region
        $region45: #{tpu_custom_call.1} parent=35 // pred_check
          %p361 = pneg %p360
        $region46: #{tpu_custom_call.1} parent=35 // pred_check_branch
          %363 = sbr.rel (%p361) target = $region48
        $region47: #{tpu_custom_call.1} parent=35 // pred_region
          %vm364 = vcmask 7168
          %365 = vst.msk [vmem:[#allocation2] sm:$0xff] %vm364, -inf
          %366 = vst.msk [vmem:[#allocation2 + $0x8] sm:$0xff] %vm364, -inf
          %367 = vst.msk [vmem:[#allocation2 + $0x10] sm:$0xff] %vm364, -inf
          %368 = vst.msk [vmem:[#allocation2 + $0x18] sm:$0xff] %vm364, -inf
          %369 = vst.msk [vmem:[#allocation2 + $0x20] sm:$0xff] %vm364, -inf
          %370 = vst.msk [vmem:[#allocation2 + $0x28] sm:$0xff] %vm364, -inf
          %371 = vst.msk [vmem:[#allocation2 + $0x30] sm:$0xff] %vm364, -inf
          %372 = vst.msk [vmem:[#allocation2 + $0x38] sm:$0xff] %vm364, -inf
          %373 = vst.msk [vmem:[#allocation2 + $0x40] sm:$0xff] %vm364, -inf
          %374 = vst.msk [vmem:[#allocation2 + $0x48] sm:$0xff] %vm364, -inf
          %375 = vst.msk [vmem:[#allocation2 + $0x50] sm:$0xff] %vm364, -inf
          %376 = vst.msk [vmem:[#allocation2 + $0x58] sm:$0xff] %vm364, -inf
          %377 = vst.msk [vmem:[#allocation2 + $0x60] sm:$0xff] %vm364, -inf
          %378 = vst.msk [vmem:[#allocation2 + $0x68] sm:$0xff] %vm364, -inf
          %379 = vst.msk [vmem:[#allocation2 + $0x70] sm:$0xff] %vm364, -inf
          %380 = vst.msk [vmem:[#allocation2 + $0x78] sm:$0xff] %vm364, -inf
          %381 = vst.msk [vmem:[#allocation3] sm:$0xff] %vm364, 0.0
          %382 = vst.msk [vmem:[#allocation3 + $0x8] sm:$0xff] %vm364, 0.0
          %383 = vst.msk [vmem:[#allocation3 + $0x10] sm:$0xff] %vm364, 0.0
          %384 = vst.msk [vmem:[#allocation3 + $0x18] sm:$0xff] %vm364, 0.0
          %385 = vst.msk [vmem:[#allocation3 + $0x20] sm:$0xff] %vm364, 0.0
          %386 = vst.msk [vmem:[#allocation3 + $0x28] sm:$0xff] %vm364, 0.0
          %387 = vst.msk [vmem:[#allocation3 + $0x30] sm:$0xff] %vm364, 0.0
          %388 = vst.msk [vmem:[#allocation3 + $0x38] sm:$0xff] %vm364, 0.0
          %389 = vst.msk [vmem:[#allocation3 + $0x40] sm:$0xff] %vm364, 0.0
          %390 = vst.msk [vmem:[#allocation3 + $0x48] sm:$0xff] %vm364, 0.0
          %391 = vst.msk [vmem:[#allocation3 + $0x50] sm:$0xff] %vm364, 0.0
          %392 = vst.msk [vmem:[#allocation3 + $0x58] sm:$0xff] %vm364, 0.0
          %393 = vst.msk [vmem:[#allocation3 + $0x60] sm:$0xff] %vm364, 0.0
          %394 = vst.msk [vmem:[#allocation3 + $0x68] sm:$0xff] %vm364, 0.0
          %395 = vst.msk [vmem:[#allocation3 + $0x70] sm:$0xff] %vm364, 0.0
          %396 = vst.msk [vmem:[#allocation3 + $0x78] sm:$0xff] %vm364, 0.0
          %397 = vst [vmem:[#allocation4] sm:$0xff] 0.0
          %398 = vst [vmem:[#allocation4 + $0x8] sm:$0xff] 0.0
          %399 = vst [vmem:[#allocation4 + $0x10] sm:$0xff] 0.0
          %400 = vst [vmem:[#allocation4 + $0x18] sm:$0xff] 0.0
          %401 = vst [vmem:[#allocation4 + $0x20] sm:$0xff] 0.0
          %402 = vst [vmem:[#allocation4 + $0x28] sm:$0xff] 0.0
          %403 = vst [vmem:[#allocation4 + $0x30] sm:$0xff] 0.0
          %404 = vst [vmem:[#allocation4 + $0x38] sm:$0xff] 0.0
          %405 = vst [vmem:[#allocation4 + $0x40] sm:$0xff] 0.0
          %406 = vst [vmem:[#allocation4 + $0x48] sm:$0xff] 0.0
          %407 = vst [vmem:[#allocation4 + $0x50] sm:$0xff] 0.0
          %408 = vst [vmem:[#allocation4 + $0x58] sm:$0xff] 0.0
          %409 = vst [vmem:[#allocation4 + $0x60] sm:$0xff] 0.0
          %410 = vst [vmem:[#allocation4 + $0x68] sm:$0xff] 0.0
          %411 = vst [vmem:[#allocation4 + $0x70] sm:$0xff] 0.0
          %412 = vst [vmem:[#allocation4 + $0x78] sm:$0xff] 0.0
        $region48: #{tpu_custom_call.1} parent=35 // pred_fallthru
          _
        %v413 = vld [vmem:[%s345] sm:$0xff]
        %v414 = vld [vmem:[%s345 + $0x8] sm:$0xff]
        %v415 = vld [vmem:[%s345 + $0x10] sm:$0xff]
        %v416 = vld [vmem:[%s345 + $0x18] sm:$0xff]
        %v417 = vld [vmem:[%s345 + $0x20] sm:$0xff]
        %v418 = vld [vmem:[%s345 + $0x28] sm:$0xff]
        %v419 = vld [vmem:[%s345 + $0x30] sm:$0xff]
        %v420 = vld [vmem:[%s345 + $0x38] sm:$0xff]
        %v421 = vld [vmem:[%s345 + $0x40] sm:$0xff]
        %v422 = vld [vmem:[%s345 + $0x48] sm:$0xff]
        %v423 = vld [vmem:[%s345 + $0x50] sm:$0xff]
        %v424 = vld [vmem:[%s345 + $0x58] sm:$0xff]
        %v425 = vld [vmem:[%s345 + $0x60] sm:$0xff]
        %v426 = vld [vmem:[%s345 + $0x68] sm:$0xff]
        %v427 = vld [vmem:[%s345 + $0x70] sm:$0xff]
        %v428 = vld [vmem:[%s345 + $0x78] sm:$0xff]
        %v429 = vmul.f32 %v413, 0.088388346
        %v430 = vmul.f32 %v414, 0.088388346
        %v431 = vmul.f32 %v415, 0.088388346
        %v432 = vmul.f32 %v416, 0.088388346
        %v433 = vmul.f32 %v417, 0.088388346
        %v434 = vmul.f32 %v418, 0.088388346
        %v435 = vmul.f32 %v419, 0.088388346
        %v436 = vmul.f32 %v420, 0.088388346
        %v437 = vmul.f32 %v421, 0.088388346
        %v438 = vmul.f32 %v422, 0.088388346
        %v439 = vmul.f32 %v423, 0.088388346
        %v440 = vmul.f32 %v424, 0.088388346
        %v441 = vmul.f32 %v425, 0.088388346
        %v442 = vmul.f32 %v426, 0.088388346
        %v443 = vmul.f32 %v427, 0.088388346
        %v444 = vmul.f32 %v428, 0.088388346
        %v445 = vld [vmem:[%s280] sm:$0xff]
        %v446 = vld [vmem:[%s280 + $0x8] sm:$0xff]
        %v447 = vld [vmem:[%s280 + $0x10] sm:$0xff]
        %v448 = vld [vmem:[%s280 + $0x18] sm:$0xff]
        %v449 = vld [vmem:[%s280 + $0x20] sm:$0xff]
        %v450 = vld [vmem:[%s280 + $0x28] sm:$0xff]
        %v451 = vld [vmem:[%s280 + $0x30] sm:$0xff]
        %v452 = vld [vmem:[%s280 + $0x38] sm:$0xff]
        %v453 = vld [vmem:[%s280 + $0x40] sm:$0xff]
        %v454 = vld [vmem:[%s280 + $0x48] sm:$0xff]
        %v455 = vld [vmem:[%s280 + $0x50] sm:$0xff]
        %v456 = vld [vmem:[%s280 + $0x58] sm:$0xff]
        %v457 = vld [vmem:[%s280 + $0x60] sm:$0xff]
        %v458 = vld [vmem:[%s280 + $0x68] sm:$0xff]
        %v459 = vld [vmem:[%s280 + $0x70] sm:$0xff]
        %v460 = vld [vmem:[%s280 + $0x78] sm:$0xff]
        %461 = vmatprep.subr.mxu0 0.0
        %462 = vmatpush1.xpose.msra.mxu0 %v445
        %463 = vmatprep.subr.mxu0 0.0
        %464 = vmatpush1.xpose.msra.mxu0 %v446
        %465 = vmatprep.subr.mxu0 0.0
        %466 = vmatpush1.xpose.msra.mxu0 %v447
        %467 = vmatprep.subr.mxu0 0.0
        %468 = vmatpush1.xpose.msra.mxu0 %v448
        %469 = vmatprep.subr.mxu0 0.0
        %470 = vmatpush1.xpose.msra.mxu0 %v449
        %471 = vmatprep.subr.mxu0 0.0
        %472 = vmatpush1.xpose.msra.mxu0 %v450
        %473 = vmatprep.subr.mxu0 0.0
        %474 = vmatpush1.xpose.msra.mxu0 %v451
        %475 = vmatprep.subr.mxu0 0.0
        %476 = vmatpush1.xpose.msra.mxu0 %v452
        %477 = vmatprep.subr.mxu0 0.0
        %478 = vmatpush1.xpose.msra.mxu0 %v453
        %479 = vmatprep.subr.mxu0 0.0
        %480 = vmatpush1.xpose.msra.mxu0 %v454
        %481 = vmatprep.subr.mxu0 0.0
        %482 = vmatpush1.xpose.msra.mxu0 %v455
        %483 = vmatprep.subr.mxu0 0.0
        %484 = vmatpush1.xpose.msra.mxu0 %v456
        %485 = vmatprep.subr.mxu0 0.0
        %486 = vmatpush1.xpose.msra.mxu0 %v457
        %487 = vmatprep.subr.mxu0 0.0
        %488 = vmatpush1.xpose.msra.mxu0 %v458
        %489 = vmatprep.subr.mxu0 0.0
        %490 = vmatpush1.xpose.msra.mxu0 %v459
        %491 = vmatprep.subr.mxu0 0.0
        %492 = vmatpush1.xpose.msra.mxu0 %v460
        %493 = vmatprep.subr.mxu0 0.0
        %494 = vmatpush1.xpose.msra.mxu0 0.0
        %495 = vmatprep.subr.mxu0 0.0
        %496 = vmatpush1.xpose.msra.mxu0 0.0
        %497 = vmatprep.subr.mxu0 0.0
        %498 = vmatpush1.xpose.msra.mxu0 0.0
        %499 = vmatprep.subr.mxu0 0.0
        %500 = vmatpush1.xpose.msra.mxu0 0.0
        %501 = vmatprep.subr.mxu0 0.0
        %502 = vmatpush1.xpose.msra.mxu0 0.0
        %503 = vmatprep.subr.mxu0 0.0
        %504 = vmatpush1.xpose.msra.mxu0 0.0
        %505 = vmatprep.subr.mxu0 0.0
        %506 = vmatpush1.xpose.msra.mxu0 0.0
        %507 = vmatprep.subr.mxu0 0.0
        %508 = vmatpush1.xpose.msra.mxu0 0.0
        %509 = vmatprep.subr.mxu0 0.0
        %510 = vmatpush1.xpose.msra.mxu0 0.0
        %511 = vmatprep.subr.mxu0 0.0
        %512 = vmatpush1.xpose.msra.mxu0 0.0
        %513 = vmatprep.subr.mxu0 0.0
        %514 = vmatpush1.xpose.msra.mxu0 0.0
        %515 = vmatprep.subr.mxu0 0.0
        %516 = vmatpush1.xpose.msra.mxu0 0.0
        %517 = vmatprep.subr.mxu0 0.0
        %518 = vmatpush1.xpose.msra.mxu0 0.0
        %519 = vmatprep.subr.mxu0 0.0
        %520 = vmatpush1.xpose.msra.mxu0 0.0
        %521 = vmatprep.subr.mxu0 0.0
        %522 = vmatpush1.xpose.msra.mxu0 0.0
        %523 = vmatprep.subr.mxu0 0.0
        %524 = vmatpush1.xpose.msra.mxu0 0.0
        %525 = vmatprep.mubr.f32.mxu0 0.0
        %526 = vmatmul.mubr.f32.gmra.mrb[0].mxu0 %v429
        %v527 = vpop.f32.mrb[0].mxu0
        %v528 = vadd.f32 0.0, %v527
        %v529 = vpop.f32.mrb[0].mxu0
        %530 = vmatprep.mubr.f32.mxu0 0.0
        %531 = vmatmul.mubr.f32.gmra.mrb[0].mxu0 %v430
        %v532 = vpop.f32.mrb[0].mxu0
        %v533 = vadd.f32 0.0, %v532
        %v534 = vpop.f32.mrb[0].mxu0
        %535 = vmatprep.mubr.f32.mxu0 0.0
        %536 = vmatmul.mubr.f32.gmra.mrb[0].mxu0 %v431
        %v537 = vpop.f32.mrb[0].mxu0
        %v538 = vadd.f32 0.0, %v537
        %v539 = vpop.f32.mrb[0].mxu0
        %540 = vmatprep.mubr.f32.mxu0 0.0
        %541 = vmatmul.mubr.f32.gmra.mrb[0].mxu0 %v432
        %v542 = vpop.f32.mrb[0].mxu0
        %v543 = vadd.f32 0.0, %v542
        %v544 = vpop.f32.mrb[0].mxu0
        %545 = vmatprep.mubr.f32.mxu0 0.0
        %546 = vmatmul.mubr.f32.gmra.mrb[0].mxu0 %v433
        %v547 = vpop.f32.mrb[0].mxu0
        %v548 = vadd.f32 0.0, %v547
        %v549 = vpop.f32.mrb[0].mxu0
        %550 = vmatprep.mubr.f32.mxu0 0.0
        %551 = vmatmul.mubr.f32.gmra.mrb[0].mxu0 %v434
        %v552 = vpop.f32.mrb[0].mxu0
        %v553 = vadd.f32 0.0, %v552
        %v554 = vpop.f32.mrb[0].mxu0
        %555 = vmatprep.mubr.f32.mxu0 0.0
        %556 = vmatmul.mubr.f32.gmra.mrb[0].mxu0 %v435
        %v557 = vpop.f32.mrb[0].mxu0
        %v558 = vadd.f32 0.0, %v557
        %v559 = vpop.f32.mrb[0].mxu0
        %560 = vmatprep.mubr.f32.mxu0 0.0
        %561 = vmatmul.mubr.f32.gmra.mrb[0].mxu0 %v436
        %v562 = vpop.f32.mrb[0].mxu0
        %v563 = vadd.f32 0.0, %v562
        %v564 = vpop.f32.mrb[0].mxu0
        %565 = vmatprep.mubr.f32.mxu0 0.0
        %566 = vmatmul.mubr.f32.gmra.mrb[0].mxu0 %v437
        %v567 = vpop.f32.mrb[0].mxu0
        %v568 = vadd.f32 0.0, %v567
        %v569 = vpop.f32.mrb[0].mxu0
        %570 = vmatprep.mubr.f32.mxu0 0.0
        %571 = vmatmul.mubr.f32.gmra.mrb[0].mxu0 %v438
        %v572 = vpop.f32.mrb[0].mxu0
        %v573 = vadd.f32 0.0, %v572
        %v574 = vpop.f32.mrb[0].mxu0
        %575 = vmatprep.mubr.f32.mxu0 0.0
        %576 = vmatmul.mubr.f32.gmra.mrb[0].mxu0 %v439
        %v577 = vpop.f32.mrb[0].mxu0
        %v578 = vadd.f32 0.0, %v577
        %v579 = vpop.f32.mrb[0].mxu0
        %580 = vmatprep.mubr.f32.mxu0 0.0
        %581 = vmatmul.mubr.f32.gmra.mrb[0].mxu0 %v440
        %v582 = vpop.f32.mrb[0].mxu0
        %v583 = vadd.f32 0.0, %v582
        %v584 = vpop.f32.mrb[0].mxu0
        %585 = vmatprep.mubr.f32.mxu0 0.0
        %586 = vmatmul.mubr.f32.gmra.mrb[0].mxu0 %v441
        %v587 = vpop.f32.mrb[0].mxu0
        %v588 = vadd.f32 0.0, %v587
        %v589 = vpop.f32.mrb[0].mxu0
        %590 = vmatprep.mubr.f32.mxu0 0.0
        %591 = vmatmul.mubr.f32.gmra.mrb[0].mxu0 %v442
        %v592 = vpop.f32.mrb[0].mxu0
        %v593 = vadd.f32 0.0, %v592
        %v594 = vpop.f32.mrb[0].mxu0
        %595 = vmatprep.mubr.f32.mxu0 0.0
        %596 = vmatmul.mubr.f32.gmra.mrb[0].mxu0 %v443
        %v597 = vpop.f32.mrb[0].mxu0
        %v598 = vadd.f32 0.0, %v597
        %v599 = vpop.f32.mrb[0].mxu0
        %600 = vmatprep.mubr.f32.mxu0 0.0
        %601 = vmatmul.mubr.f32.gmra.mrb[0].mxu0 %v444
        %v602 = vpop.f32.mrb[0].mxu0
        %v603 = vadd.f32 0.0, %v602
        %v604 = vpop.f32.mrb[0].mxu0
        %605 = vdwg.mxu0
        %s606 = smul.u32 %s31, 128
        %v607 = vlaneseq
        %v608 = vand.u32 %v607, 127
        %v609 = vstv %s606
        %v610 = vadd.s32 %v609, %v608
        %v611 = vld [vmem:[%s357] sm:$0xff]
        %v612 = vld [vmem:[%s357 + $0x8] sm:$0xff]
        %v613 = vld [vmem:[%s357 + $0x10] sm:$0xff]
        %v614 = vld [vmem:[%s357 + $0x18] sm:$0xff]
        %v615 = vld [vmem:[%s357 + $0x20] sm:$0xff]
        %v616 = vld [vmem:[%s357 + $0x28] sm:$0xff]
        %v617 = vld [vmem:[%s357 + $0x30] sm:$0xff]
        %v618 = vld [vmem:[%s357 + $0x38] sm:$0xff]
        %v619 = vld [vmem:[%s357 + $0x40] sm:$0xff]
        %v620 = vld [vmem:[%s357 + $0x48] sm:$0xff]
        %v621 = vld [vmem:[%s357 + $0x50] sm:$0xff]
        %v622 = vld [vmem:[%s357 + $0x58] sm:$0xff]
        %v623 = vld [vmem:[%s357 + $0x60] sm:$0xff]
        %v624 = vld [vmem:[%s357 + $0x68] sm:$0xff]
        %v625 = vld [vmem:[%s357 + $0x70] sm:$0xff]
        %v626 = vld [vmem:[%s357 + $0x78] sm:$0xff]
        %627 = vset.pattern.permute.xlu0 0
        %628 = vperm.xlu0 %627, %v611
        %v629 = vpop.permute.xlu0 %628
        %630 = vset.pattern.permute.xlu0 0
        %631 = vperm.xlu0 %630, %v612
        %v632 = vpop.permute.xlu0 %631
        %633 = vset.pattern.permute.xlu0 0
        %634 = vperm.xlu0 %633, %v613
        %v635 = vpop.permute.xlu0 %634
        %636 = vset.pattern.permute.xlu0 0
        %637 = vperm.xlu0 %636, %v614
        %v638 = vpop.permute.xlu0 %637
        %639 = vset.pattern.permute.xlu0 0
        %640 = vperm.xlu0 %639, %v615
        %v641 = vpop.permute.xlu0 %640
        %642 = vset.pattern.permute.xlu0 0
        %643 = vperm.xlu0 %642, %v616
        %v644 = vpop.permute.xlu0 %643
        %645 = vset.pattern.permute.xlu0 0
        %646 = vperm.xlu0 %645, %v617
        %v647 = vpop.permute.xlu0 %646
        %648 = vset.pattern.permute.xlu0 0
        %649 = vperm.xlu0 %648, %v618
        %v650 = vpop.permute.xlu0 %649
        %651 = vset.pattern.permute.xlu0 0
        %652 = vperm.xlu0 %651, %v619
        %v653 = vpop.permute.xlu0 %652
        %654 = vset.pattern.permute.xlu0 0
        %655 = vperm.xlu0 %654, %v620
        %v656 = vpop.permute.xlu0 %655
        %657 = vset.pattern.permute.xlu0 0
        %658 = vperm.xlu0 %657, %v621
        %v659 = vpop.permute.xlu0 %658
        %660 = vset.pattern.permute.xlu0 0
        %661 = vperm.xlu0 %660, %v622
        %v662 = vpop.permute.xlu0 %661
        %663 = vset.pattern.permute.xlu0 0
        %664 = vperm.xlu0 %663, %v623
        %v665 = vpop.permute.xlu0 %664
        %666 = vset.pattern.permute.xlu0 0
        %667 = vperm.xlu0 %666, %v624
        %v668 = vpop.permute.xlu0 %667
        %669 = vset.pattern.permute.xlu0 0
        %670 = vperm.xlu0 %669, %v625
        %v671 = vpop.permute.xlu0 %670
        %672 = vset.pattern.permute.xlu0 0
        %673 = vperm.xlu0 %672, %v626
        %v674 = vpop.permute.xlu0 %673
        %vm675 = vcmp.lt.s32.totalorder %v610, %v629
        %vm676 = vcmp.lt.s32.totalorder %v610, %v632
        %vm677 = vcmp.lt.s32.totalorder %v610, %v635
        %vm678 = vcmp.lt.s32.totalorder %v610, %v638
        %vm679 = vcmp.lt.s32.totalorder %v610, %v641
        %vm680 = vcmp.lt.s32.totalorder %v610, %v644
        %vm681 = vcmp.lt.s32.totalorder %v610, %v647
        %vm682 = vcmp.lt.s32.totalorder %v610, %v650
        %vm683 = vcmp.lt.s32.totalorder %v610, %v653
        %vm684 = vcmp.lt.s32.totalorder %v610, %v656
        %vm685 = vcmp.lt.s32.totalorder %v610, %v659
        %vm686 = vcmp.lt.s32.totalorder %v610, %v662
        %vm687 = vcmp.lt.s32.totalorder %v610, %v665
        %vm688 = vcmp.lt.s32.totalorder %v610, %v668
        %vm689 = vcmp.lt.s32.totalorder %v610, %v671
        %vm690 = vcmp.lt.s32.totalorder %v610, %v674
        %v691 = vsel %vm675, %v528, -1000000.0
        %v692 = vsel %vm676, %v533, -1000000.0
        %v693 = vsel %vm677, %v538, -1000000.0
        %v694 = vsel %vm678, %v543, -1000000.0
        %v695 = vsel %vm679, %v548, -1000000.0
        %v696 = vsel %vm680, %v553, -1000000.0
        %v697 = vsel %vm681, %v558, -1000000.0
        %v698 = vsel %vm682, %v563, -1000000.0
        %v699 = vsel %vm683, %v568, -1000000.0
        %v700 = vsel %vm684, %v573, -1000000.0
        %v701 = vsel %vm685, %v578, -1000000.0
        %v702 = vsel %vm686, %v583, -1000000.0
        %v703 = vsel %vm687, %v588, -1000000.0
        %v704 = vsel %vm688, %v593, -1000000.0
        %v705 = vsel %vm689, %v598, -1000000.0
        %v706 = vsel %vm690, %v603, -1000000.0
        %v707 = vld [vmem:[#allocation2] sm:$0xff]
        %v708 = vld [vmem:[#allocation2 + $0x8] sm:$0xff]
        %v709 = vld [vmem:[#allocation2 + $0x10] sm:$0xff]
        %v710 = vld [vmem:[#allocation2 + $0x18] sm:$0xff]
        %v711 = vld [vmem:[#allocation2 + $0x20] sm:$0xff]
        %v712 = vld [vmem:[#allocation2 + $0x28] sm:$0xff]
        %v713 = vld [vmem:[#allocation2 + $0x30] sm:$0xff]
        %v714 = vld [vmem:[#allocation2 + $0x38] sm:$0xff]
        %v715 = vld [vmem:[#allocation2 + $0x40] sm:$0xff]
        %v716 = vld [vmem:[#allocation2 + $0x48] sm:$0xff]
        %v717 = vld [vmem:[#allocation2 + $0x50] sm:$0xff]
        %v718 = vld [vmem:[#allocation2 + $0x58] sm:$0xff]
        %v719 = vld [vmem:[#allocation2 + $0x60] sm:$0xff]
        %v720 = vld [vmem:[#allocation2 + $0x68] sm:$0xff]
        %v721 = vld [vmem:[#allocation2 + $0x70] sm:$0xff]
        %v722 = vld [vmem:[#allocation2 + $0x78] sm:$0xff]
        %723 = vmax.xlane.f32.xlu0 %v691
        %v724 = vpop.xlane.xlu0 %723
        %725 = vmax.xlane.f32.xlu0 %v692
        %v726 = vpop.xlane.xlu0 %725
        %727 = vmax.xlane.f32.xlu0 %v693
        %v728 = vpop.xlane.xlu0 %727
        %729 = vmax.xlane.f32.xlu0 %v694
        %v730 = vpop.xlane.xlu0 %729
        %731 = vmax.xlane.f32.xlu0 %v695
        %v732 = vpop.xlane.xlu0 %731
        %733 = vmax.xlane.f32.xlu0 %v696
        %v734 = vpop.xlane.xlu0 %733
        %735 = vmax.xlane.f32.xlu0 %v697
        %v736 = vpop.xlane.xlu0 %735
        %737 = vmax.xlane.f32.xlu0 %v698
        %v738 = vpop.xlane.xlu0 %737
        %739 = vmax.xlane.f32.xlu0 %v699
        %v740 = vpop.xlane.xlu0 %739
        %741 = vmax.xlane.f32.xlu0 %v700
        %v742 = vpop.xlane.xlu0 %741
        %743 = vmax.xlane.f32.xlu0 %v701
        %v744 = vpop.xlane.xlu0 %743
        %745 = vmax.xlane.f32.xlu0 %v702
        %v746 = vpop.xlane.xlu0 %745
        %747 = vmax.xlane.f32.xlu0 %v703
        %v748 = vpop.xlane.xlu0 %747
        %749 = vmax.xlane.f32.xlu0 %v704
        %v750 = vpop.xlane.xlu0 %749
        %751 = vmax.xlane.f32.xlu0 %v705
        %v752 = vpop.xlane.xlu0 %751
        %753 = vmax.xlane.f32.xlu0 %v706
        %v754 = vpop.xlane.xlu0 %753
        %v755 = vmax.f32 %v707, %v724
        %v756 = vmax.f32 %v708, %v726
        %v757 = vmax.f32 %v709, %v728
        %v758 = vmax.f32 %v710, %v730
        %v759 = vmax.f32 %v711, %v732
        %v760 = vmax.f32 %v712, %v734
        %v761 = vmax.f32 %v713, %v736
        %v762 = vmax.f32 %v714, %v738
        %v763 = vmax.f32 %v715, %v740
        %v764 = vmax.f32 %v716, %v742
        %v765 = vmax.f32 %v717, %v744
        %v766 = vmax.f32 %v718, %v746
        %v767 = vmax.f32 %v719, %v748
        %v768 = vmax.f32 %v720, %v750
        %v769 = vmax.f32 %v721, %v752
        %v770 = vmax.f32 %v722, %v754
        %v771 = vsub.f32 %v707, %v755
        %v772 = vsub.f32 %v708, %v756
        %v773 = vsub.f32 %v709, %v757
        %v774 = vsub.f32 %v710, %v758
        %v775 = vsub.f32 %v711, %v759
        %v776 = vsub.f32 %v712, %v760
        %v777 = vsub.f32 %v713, %v761
        %v778 = vsub.f32 %v714, %v762
        %v779 = vsub.f32 %v715, %v763
        %v780 = vsub.f32 %v716, %v764
        %v781 = vsub.f32 %v717, %v765
        %v782 = vsub.f32 %v718, %v766
        %v783 = vsub.f32 %v719, %v767
        %v784 = vsub.f32 %v720, %v768
        %v785 = vsub.f32 %v721, %v769
        %v786 = vsub.f32 %v722, %v770
        %v787 = vmul.f32 %v771, 1.442695
        %v788 = vpow.pop %v787
        %v789 = vmul.f32 %v772, 1.442695
        %v790 = vpow.pop %v789
        %v791 = vmul.f32 %v773, 1.442695
        %v792 = vpow.pop %v791
        %v793 = vmul.f32 %v774, 1.442695
        %v794 = vpow.pop %v793
        %v795 = vmul.f32 %v775, 1.442695
        %v796 = vpow.pop %v795
        %v797 = vmul.f32 %v776, 1.442695
        %v798 = vpow.pop %v797
        %v799 = vmul.f32 %v777, 1.442695
        %v800 = vpow.pop %v799
        %v801 = vmul.f32 %v778, 1.442695
        %v802 = vpow.pop %v801
        %v803 = vmul.f32 %v779, 1.442695
        %v804 = vpow.pop %v803
        %v805 = vmul.f32 %v780, 1.442695
        %v806 = vpow.pop %v805
        %v807 = vmul.f32 %v781, 1.442695
        %v808 = vpow.pop %v807
        %v809 = vmul.f32 %v782, 1.442695
        %v810 = vpow.pop %v809
        %v811 = vmul.f32 %v783, 1.442695
        %v812 = vpow.pop %v811
        %v813 = vmul.f32 %v784, 1.442695
        %v814 = vpow.pop %v813
        %v815 = vmul.f32 %v785, 1.442695
        %v816 = vpow.pop %v815
        %v817 = vmul.f32 %v786, 1.442695
        %v818 = vpow.pop %v817
        %820 = vset.pattern.permute.xlu0 0
        %821 = vperm.xlu0 %820, %v755
        %v822 = vpop.permute.xlu0 %821
        %825 = vset.pattern.permute.xlu0 0
        %826 = vperm.xlu0 %825, %v756
        %v827 = vpop.permute.xlu0 %826
        %830 = vset.pattern.permute.xlu0 0
        %831 = vperm.xlu0 %830, %v757
        %v832 = vpop.permute.xlu0 %831
        %835 = vset.pattern.permute.xlu0 0
        %836 = vperm.xlu0 %835, %v758
        %v837 = vpop.permute.xlu0 %836
        %840 = vset.pattern.permute.xlu0 0
        %841 = vperm.xlu0 %840, %v759
        %v842 = vpop.permute.xlu0 %841
        %845 = vset.pattern.permute.xlu0 0
        %846 = vperm.xlu0 %845, %v760
        %v847 = vpop.permute.xlu0 %846
        %850 = vset.pattern.permute.xlu0 0
        %851 = vperm.xlu0 %850, %v761
        %v852 = vpop.permute.xlu0 %851
        %855 = vset.pattern.permute.xlu0 0
        %856 = vperm.xlu0 %855, %v762
        %v857 = vpop.permute.xlu0 %856
        %860 = vset.pattern.permute.xlu0 0
        %861 = vperm.xlu0 %860, %v763
        %v862 = vpop.permute.xlu0 %861
        %865 = vset.pattern.permute.xlu0 0
        %866 = vperm.xlu0 %865, %v764
        %v867 = vpop.permute.xlu0 %866
        %870 = vset.pattern.permute.xlu0 0
        %871 = vperm.xlu0 %870, %v765
        %v872 = vpop.permute.xlu0 %871
        %875 = vset.pattern.permute.xlu0 0
        %876 = vperm.xlu0 %875, %v766
        %v877 = vpop.permute.xlu0 %876
        %880 = vset.pattern.permute.xlu0 0
        %881 = vperm.xlu0 %880, %v767
        %v882 = vpop.permute.xlu0 %881
        %885 = vset.pattern.permute.xlu0 0
        %886 = vperm.xlu0 %885, %v768
        %v887 = vpop.permute.xlu0 %886
        %890 = vset.pattern.permute.xlu0 0
        %891 = vperm.xlu0 %890, %v769
        %v892 = vpop.permute.xlu0 %891
        %895 = vset.pattern.permute.xlu0 0
        %896 = vperm.xlu0 %895, %v770
        %v897 = vpop.permute.xlu0 %896
        %v899 = vsub.f32 %v691, %v822
        %v900 = vsub.f32 %v692, %v827
        %v901 = vsub.f32 %v693, %v832
        %v902 = vsub.f32 %v694, %v837
        %v903 = vsub.f32 %v695, %v842
        %v904 = vsub.f32 %v696, %v847
        %v905 = vsub.f32 %v697, %v852
        %v906 = vsub.f32 %v698, %v857
        %v907 = vsub.f32 %v699, %v862
        %v908 = vsub.f32 %v700, %v867
        %v909 = vsub.f32 %v701, %v872
        %v910 = vsub.f32 %v702, %v877
        %v911 = vsub.f32 %v703, %v882
        %v912 = vsub.f32 %v704, %v887
        %v913 = vsub.f32 %v705, %v892
        %v914 = vsub.f32 %v706, %v897
        %v915 = vmul.f32 %v899, 1.442695
        %v916 = vpow.pop %v915
        %v917 = vmul.f32 %v900, 1.442695
        %v918 = vpow.pop %v917
        %v919 = vmul.f32 %v901, 1.442695
        %v920 = vpow.pop %v919
        %v921 = vmul.f32 %v902, 1.442695
        %v922 = vpow.pop %v921
        %v923 = vmul.f32 %v903, 1.442695
        %v924 = vpow.pop %v923
        %v925 = vmul.f32 %v904, 1.442695
        %v926 = vpow.pop %v925
        %v927 = vmul.f32 %v905, 1.442695
        %v928 = vpow.pop %v927
        %v929 = vmul.f32 %v906, 1.442695
        %v930 = vpow.pop %v929
        %v931 = vmul.f32 %v907, 1.442695
        %v932 = vpow.pop %v931
        %v933 = vmul.f32 %v908, 1.442695
        %v934 = vpow.pop %v933
        %v935 = vmul.f32 %v909, 1.442695
        %v936 = vpow.pop %v935
        %v937 = vmul.f32 %v910, 1.442695
        %v938 = vpow.pop %v937
        %v939 = vmul.f32 %v911, 1.442695
        %v940 = vpow.pop %v939
        %v941 = vmul.f32 %v912, 1.442695
        %v942 = vpow.pop %v941
        %v943 = vmul.f32 %v913, 1.442695
        %v944 = vpow.pop %v943
        %v945 = vmul.f32 %v914, 1.442695
        %v946 = vpow.pop %v945
        %v947 = vld [vmem:[#allocation3] sm:$0xff]
        %v948 = vld [vmem:[#allocation3 + $0x8] sm:$0xff]
        %v949 = vld [vmem:[#allocation3 + $0x10] sm:$0xff]
        %v950 = vld [vmem:[#allocation3 + $0x18] sm:$0xff]
        %v951 = vld [vmem:[#allocation3 + $0x20] sm:$0xff]
        %v952 = vld [vmem:[#allocation3 + $0x28] sm:$0xff]
        %v953 = vld [vmem:[#allocation3 + $0x30] sm:$0xff]
        %v954 = vld [vmem:[#allocation3 + $0x38] sm:$0xff]
        %v955 = vld [vmem:[#allocation3 + $0x40] sm:$0xff]
        %v956 = vld [vmem:[#allocation3 + $0x48] sm:$0xff]
        %v957 = vld [vmem:[#allocation3 + $0x50] sm:$0xff]
        %v958 = vld [vmem:[#allocation3 + $0x58] sm:$0xff]
        %v959 = vld [vmem:[#allocation3 + $0x60] sm:$0xff]
        %v960 = vld [vmem:[#allocation3 + $0x68] sm:$0xff]
        %v961 = vld [vmem:[#allocation3 + $0x70] sm:$0xff]
        %v962 = vld [vmem:[#allocation3 + $0x78] sm:$0xff]
        %v963 = vmul.f32 %v788, %v947
        %v964 = vmul.f32 %v790, %v948
        %v965 = vmul.f32 %v792, %v949
        %v966 = vmul.f32 %v794, %v950
        %v967 = vmul.f32 %v796, %v951
        %v968 = vmul.f32 %v798, %v952
        %v969 = vmul.f32 %v800, %v953
        %v970 = vmul.f32 %v802, %v954
        %v971 = vmul.f32 %v804, %v955
        %v972 = vmul.f32 %v806, %v956
        %v973 = vmul.f32 %v808, %v957
        %v974 = vmul.f32 %v810, %v958
        %v975 = vmul.f32 %v812, %v959
        %v976 = vmul.f32 %v814, %v960
        %v977 = vmul.f32 %v816, %v961
        %v978 = vmul.f32 %v818, %v962
        %979 = vadd.xlane.f32.xlu0 %v916
        %v980 = vpop.xlane.xlu0 %979
        %981 = vadd.xlane.f32.xlu0 %v918
        %v982 = vpop.xlane.xlu0 %981
        %983 = vadd.xlane.f32.xlu0 %v920
        %v984 = vpop.xlane.xlu0 %983
        %985 = vadd.xlane.f32.xlu0 %v922
        %v986 = vpop.xlane.xlu0 %985
        %987 = vadd.xlane.f32.xlu0 %v924
        %v988 = vpop.xlane.xlu0 %987
        %989 = vadd.xlane.f32.xlu0 %v926
        %v990 = vpop.xlane.xlu0 %989
        %991 = vadd.xlane.f32.xlu0 %v928
        %v992 = vpop.xlane.xlu0 %991
        %993 = vadd.xlane.f32.xlu0 %v930
        %v994 = vpop.xlane.xlu0 %993
        %995 = vadd.xlane.f32.xlu0 %v932
        %v996 = vpop.xlane.xlu0 %995
        %997 = vadd.xlane.f32.xlu0 %v934
        %v998 = vpop.xlane.xlu0 %997
        %999 = vadd.xlane.f32.xlu0 %v936
        %v1000 = vpop.xlane.xlu0 %999
        %1001 = vadd.xlane.f32.xlu0 %v938
        %v1002 = vpop.xlane.xlu0 %1001
        %1003 = vadd.xlane.f32.xlu0 %v940
        %v1004 = vpop.xlane.xlu0 %1003
        %1005 = vadd.xlane.f32.xlu0 %v942
        %v1006 = vpop.xlane.xlu0 %1005
        %1007 = vadd.xlane.f32.xlu0 %v944
        %v1008 = vpop.xlane.xlu0 %1007
        %1009 = vadd.xlane.f32.xlu0 %v946
        %v1010 = vpop.xlane.xlu0 %1009
        %v1011 = vadd.f32 %v963, %v980
        %v1012 = vadd.f32 %v964, %v982
        %v1013 = vadd.f32 %v965, %v984
        %v1014 = vadd.f32 %v966, %v986
        %v1015 = vadd.f32 %v967, %v988
        %v1016 = vadd.f32 %v968, %v990
        %v1017 = vadd.f32 %v969, %v992
        %v1018 = vadd.f32 %v970, %v994
        %v1019 = vadd.f32 %v971, %v996
        %v1020 = vadd.f32 %v972, %v998
        %v1021 = vadd.f32 %v973, %v1000
        %v1022 = vadd.f32 %v974, %v1002
        %v1023 = vadd.f32 %v975, %v1004
        %v1024 = vadd.f32 %v976, %v1006
        %v1025 = vadd.f32 %v977, %v1008
        %v1026 = vadd.f32 %v978, %v1010
        %vm1027 = vcmask 7168
        %1028 = vst.msk [vmem:[#allocation3] sm:$0xff] %vm1027, %v1011
        %1029 = vst.msk [vmem:[#allocation3 + $0x8] sm:$0xff] %vm1027, %v1012
        %1030 = vst.msk [vmem:[#allocation3 + $0x10] sm:$0xff] %vm1027, %v1013
        %1031 = vst.msk [vmem:[#allocation3 + $0x18] sm:$0xff] %vm1027, %v1014
        %1032 = vst.msk [vmem:[#allocation3 + $0x20] sm:$0xff] %vm1027, %v1015
        %1033 = vst.msk [vmem:[#allocation3 + $0x28] sm:$0xff] %vm1027, %v1016
        %1034 = vst.msk [vmem:[#allocation3 + $0x30] sm:$0xff] %vm1027, %v1017
        %1035 = vst.msk [vmem:[#allocation3 + $0x38] sm:$0xff] %vm1027, %v1018
        %1036 = vst.msk [vmem:[#allocation3 + $0x40] sm:$0xff] %vm1027, %v1019
        %1037 = vst.msk [vmem:[#allocation3 + $0x48] sm:$0xff] %vm1027, %v1020
        %1038 = vst.msk [vmem:[#allocation3 + $0x50] sm:$0xff] %vm1027, %v1021
        %1039 = vst.msk [vmem:[#allocation3 + $0x58] sm:$0xff] %vm1027, %v1022
        %1040 = vst.msk [vmem:[#allocation3 + $0x60] sm:$0xff] %vm1027, %v1023
        %1041 = vst.msk [vmem:[#allocation3 + $0x68] sm:$0xff] %vm1027, %v1024
        %1042 = vst.msk [vmem:[#allocation3 + $0x70] sm:$0xff] %vm1027, %v1025
        %1043 = vst.msk [vmem:[#allocation3 + $0x78] sm:$0xff] %vm1027, %v1026
        %v1044 = vld [vmem:[#allocation4] sm:$0xff]
        %v1045 = vld [vmem:[#allocation4 + $0x8] sm:$0xff]
        %v1046 = vld [vmem:[#allocation4 + $0x10] sm:$0xff]
        %v1047 = vld [vmem:[#allocation4 + $0x18] sm:$0xff]
        %v1048 = vld [vmem:[#allocation4 + $0x20] sm:$0xff]
        %v1049 = vld [vmem:[#allocation4 + $0x28] sm:$0xff]
        %v1050 = vld [vmem:[#allocation4 + $0x30] sm:$0xff]
        %v1051 = vld [vmem:[#allocation4 + $0x38] sm:$0xff]
        %v1052 = vld [vmem:[#allocation4 + $0x40] sm:$0xff]
        %v1053 = vld [vmem:[#allocation4 + $0x48] sm:$0xff]
        %v1054 = vld [vmem:[#allocation4 + $0x50] sm:$0xff]
        %v1055 = vld [vmem:[#allocation4 + $0x58] sm:$0xff]
        %v1056 = vld [vmem:[#allocation4 + $0x60] sm:$0xff]
        %v1057 = vld [vmem:[#allocation4 + $0x68] sm:$0xff]
        %v1058 = vld [vmem:[#allocation4 + $0x70] sm:$0xff]
        %v1059 = vld [vmem:[#allocation4 + $0x78] sm:$0xff]
        %1061 = vset.pattern.permute.xlu0 0
        %1062 = vperm.xlu0 %1061, %v788
        %v1063 = vpop.permute.xlu0 %1062
        %1066 = vset.pattern.permute.xlu0 0
        %1067 = vperm.xlu0 %1066, %v790
        %v1068 = vpop.permute.xlu0 %1067
        %1071 = vset.pattern.permute.xlu0 0
        %1072 = vperm.xlu0 %1071, %v792
        %v1073 = vpop.permute.xlu0 %1072
        %1076 = vset.pattern.permute.xlu0 0
        %1077 = vperm.xlu0 %1076, %v794
        %v1078 = vpop.permute.xlu0 %1077
        %1081 = vset.pattern.permute.xlu0 0
        %1082 = vperm.xlu0 %1081, %v796
        %v1083 = vpop.permute.xlu0 %1082
        %1086 = vset.pattern.permute.xlu0 0
        %1087 = vperm.xlu0 %1086, %v798
        %v1088 = vpop.permute.xlu0 %1087
        %1091 = vset.pattern.permute.xlu0 0
        %1092 = vperm.xlu0 %1091, %v800
        %v1093 = vpop.permute.xlu0 %1092
        %1096 = vset.pattern.permute.xlu0 0
        %1097 = vperm.xlu0 %1096, %v802
        %v1098 = vpop.permute.xlu0 %1097
        %1101 = vset.pattern.permute.xlu0 0
        %1102 = vperm.xlu0 %1101, %v804
        %v1103 = vpop.permute.xlu0 %1102
        %1106 = vset.pattern.permute.xlu0 0
        %1107 = vperm.xlu0 %1106, %v806
        %v1108 = vpop.permute.xlu0 %1107
        %1111 = vset.pattern.permute.xlu0 0
        %1112 = vperm.xlu0 %1111, %v808
        %v1113 = vpop.permute.xlu0 %1112
        %1116 = vset.pattern.permute.xlu0 0
        %1117 = vperm.xlu0 %1116, %v810
        %v1118 = vpop.permute.xlu0 %1117
        %1121 = vset.pattern.permute.xlu0 0
        %1122 = vperm.xlu0 %1121, %v812
        %v1123 = vpop.permute.xlu0 %1122
        %1126 = vset.pattern.permute.xlu0 0
        %1127 = vperm.xlu0 %1126, %v814
        %v1128 = vpop.permute.xlu0 %1127
        %1131 = vset.pattern.permute.xlu0 0
        %1132 = vperm.xlu0 %1131, %v816
        %v1133 = vpop.permute.xlu0 %1132
        %1136 = vset.pattern.permute.xlu0 0
        %1137 = vperm.xlu0 %1136, %v818
        %v1138 = vpop.permute.xlu0 %1137
        %v1140 = vmul.f32 %v1063, %v1044
        %v1141 = vmul.f32 %v1068, %v1045
        %v1142 = vmul.f32 %v1073, %v1046
        %v1143 = vmul.f32 %v1078, %v1047
        %v1144 = vmul.f32 %v1083, %v1048
        %v1145 = vmul.f32 %v1088, %v1049
        %v1146 = vmul.f32 %v1093, %v1050
        %v1147 = vmul.f32 %v1098, %v1051
        %v1148 = vmul.f32 %v1103, %v1052
        %v1149 = vmul.f32 %v1108, %v1053
        %v1150 = vmul.f32 %v1113, %v1054
        %v1151 = vmul.f32 %v1118, %v1055
        %v1152 = vmul.f32 %v1123, %v1056
        %v1153 = vmul.f32 %v1128, %v1057
        %v1154 = vmul.f32 %v1133, %v1058
        %v1155 = vmul.f32 %v1138, %v1059
        %v1156 = vld [vmem:[%s289] sm:$0xff]
        %v1157 = vld [vmem:[%s289 + $0x8] sm:$0xff]
        %v1158 = vld [vmem:[%s289 + $0x10] sm:$0xff]
        %v1159 = vld [vmem:[%s289 + $0x18] sm:$0xff]
        %v1160 = vld [vmem:[%s289 + $0x20] sm:$0xff]
        %v1161 = vld [vmem:[%s289 + $0x28] sm:$0xff]
        %v1162 = vld [vmem:[%s289 + $0x30] sm:$0xff]
        %v1163 = vld [vmem:[%s289 + $0x38] sm:$0xff]
        %v1164 = vld [vmem:[%s289 + $0x40] sm:$0xff]
        %v1165 = vld [vmem:[%s289 + $0x48] sm:$0xff]
        %v1166 = vld [vmem:[%s289 + $0x50] sm:$0xff]
        %v1167 = vld [vmem:[%s289 + $0x58] sm:$0xff]
        %v1168 = vld [vmem:[%s289 + $0x60] sm:$0xff]
        %v1169 = vld [vmem:[%s289 + $0x68] sm:$0xff]
        %v1170 = vld [vmem:[%s289 + $0x70] sm:$0xff]
        %v1171 = vld [vmem:[%s289 + $0x78] sm:$0xff]
        %1172 = vmatprep.subr.mxu0 0.0
        %1173 = vmatpush1.msra.mxu0 %v1156
        %1174 = vmatprep.subr.mxu0 0.0
        %1175 = vmatpush1.msra.mxu0 %v1157
        %1176 = vmatprep.subr.mxu0 0.0
        %1177 = vmatpush1.msra.mxu0 %v1158
        %1178 = vmatprep.subr.mxu0 0.0
        %1179 = vmatpush1.msra.mxu0 %v1159
        %1180 = vmatprep.subr.mxu0 0.0
        %1181 = vmatpush1.msra.mxu0 %v1160
        %1182 = vmatprep.subr.mxu0 0.0
        %1183 = vmatpush1.msra.mxu0 %v1161
        %1184 = vmatprep.subr.mxu0 0.0
        %1185 = vmatpush1.msra.mxu0 %v1162
        %1186 = vmatprep.subr.mxu0 0.0
        %1187 = vmatpush1.msra.mxu0 %v1163
        %1188 = vmatprep.subr.mxu0 0.0
        %1189 = vmatpush1.msra.mxu0 %v1164
        %1190 = vmatprep.subr.mxu0 0.0
        %1191 = vmatpush1.msra.mxu0 %v1165
        %1192 = vmatprep.subr.mxu0 0.0
        %1193 = vmatpush1.msra.mxu0 %v1166
        %1194 = vmatprep.subr.mxu0 0.0
        %1195 = vmatpush1.msra.mxu0 %v1167
        %1196 = vmatprep.subr.mxu0 0.0
        %1197 = vmatpush1.msra.mxu0 %v1168
        %1198 = vmatprep.subr.mxu0 0.0
        %1199 = vmatpush1.msra.mxu0 %v1169
        %1200 = vmatprep.subr.mxu0 0.0
        %1201 = vmatpush1.msra.mxu0 %v1170
        %1202 = vmatprep.subr.mxu0 0.0
        %1203 = vmatpush1.msra.mxu0 %v1171
        %1204 = vmatprep.subr.mxu0 0.0
        %1205 = vmatpush1.msra.mxu0 0.0
        %1206 = vmatprep.subr.mxu0 0.0
        %1207 = vmatpush1.msra.mxu0 0.0
        %1208 = vmatprep.subr.mxu0 0.0
        %1209 = vmatpush1.msra.mxu0 0.0
        %1210 = vmatprep.subr.mxu0 0.0
        %1211 = vmatpush1.msra.mxu0 0.0
        %1212 = vmatprep.subr.mxu0 0.0
        %1213 = vmatpush1.msra.mxu0 0.0
        %1214 = vmatprep.subr.mxu0 0.0
        %1215 = vmatpush1.msra.mxu0 0.0
        %1216 = vmatprep.subr.mxu0 0.0
        %1217 = vmatpush1.msra.mxu0 0.0
        %1218 = vmatprep.subr.mxu0 0.0
        %1219 = vmatpush1.msra.mxu0 0.0
        %1220 = vmatprep.subr.mxu0 0.0
        %1221 = vmatpush1.msra.mxu0 0.0
        %1222 = vmatprep.subr.mxu0 0.0
        %1223 = vmatpush1.msra.mxu0 0.0
        %1224 = vmatprep.subr.mxu0 0.0
        %1225 = vmatpush1.msra.mxu0 0.0
        %1226 = vmatprep.subr.mxu0 0.0
        %1227 = vmatpush1.msra.mxu0 0.0
        %1228 = vmatprep.subr.mxu0 0.0
        %1229 = vmatpush1.msra.mxu0 0.0
        %1230 = vmatprep.subr.mxu0 0.0
        %1231 = vmatpush1.msra.mxu0 0.0
        %1232 = vmatprep.subr.mxu0 0.0
        %1233 = vmatpush1.msra.mxu0 0.0
        %1234 = vmatprep.subr.mxu0 0.0
        %1235 = vmatpush1.msra.mxu0 0.0
        %1236 = vmatprep.mubr.f32.mxu0 0.0
        %1237 = vmatmul.mubr.f32.gmra.mrb[0].mxu0 %v916
        %v1238 = vpop.f32.mrb[0].mxu0
        %v1239 = vadd.f32 0.0, %v1238
        %v1240 = vpop.f32.mrb[0].mxu0
        %1241 = vmatprep.mubr.f32.mxu0 0.0
        %1242 = vmatmul.mubr.f32.gmra.mrb[0].mxu0 %v918
        %v1243 = vpop.f32.mrb[0].mxu0
        %v1244 = vadd.f32 0.0, %v1243
        %v1245 = vpop.f32.mrb[0].mxu0
        %1246 = vmatprep.mubr.f32.mxu0 0.0
        %1247 = vmatmul.mubr.f32.gmra.mrb[0].mxu0 %v920
        %v1248 = vpop.f32.mrb[0].mxu0
        %v1249 = vadd.f32 0.0, %v1248
        %v1250 = vpop.f32.mrb[0].mxu0
        %1251 = vmatprep.mubr.f32.mxu0 0.0
        %1252 = vmatmul.mubr.f32.gmra.mrb[0].mxu0 %v922
        %v1253 = vpop.f32.mrb[0].mxu0
        %v1254 = vadd.f32 0.0, %v1253
        %v1255 = vpop.f32.mrb[0].mxu0
        %1256 = vmatprep.mubr.f32.mxu0 0.0
        %1257 = vmatmul.mubr.f32.gmra.mrb[0].mxu0 %v924
        %v1258 = vpop.f32.mrb[0].mxu0
        %v1259 = vadd.f32 0.0, %v1258
        %v1260 = vpop.f32.mrb[0].mxu0
        %1261 = vmatprep.mubr.f32.mxu0 0.0
        %1262 = vmatmul.mubr.f32.gmra.mrb[0].mxu0 %v926
        %v1263 = vpop.f32.mrb[0].mxu0
        %v1264 = vadd.f32 0.0, %v1263
        %v1265 = vpop.f32.mrb[0].mxu0
        %1266 = vmatprep.mubr.f32.mxu0 0.0
        %1267 = vmatmul.mubr.f32.gmra.mrb[0].mxu0 %v928
        %v1268 = vpop.f32.mrb[0].mxu0
        %v1269 = vadd.f32 0.0, %v1268
        %v1270 = vpop.f32.mrb[0].mxu0
        %1271 = vmatprep.mubr.f32.mxu0 0.0
        %1272 = vmatmul.mubr.f32.gmra.mrb[0].mxu0 %v930
        %v1273 = vpop.f32.mrb[0].mxu0
        %v1274 = vadd.f32 0.0, %v1273
        %v1275 = vpop.f32.mrb[0].mxu0
        %1276 = vmatprep.mubr.f32.mxu0 0.0
        %1277 = vmatmul.mubr.f32.gmra.mrb[0].mxu0 %v932
        %v1278 = vpop.f32.mrb[0].mxu0
        %v1279 = vadd.f32 0.0, %v1278
        %v1280 = vpop.f32.mrb[0].mxu0
        %1281 = vmatprep.mubr.f32.mxu0 0.0
        %1282 = vmatmul.mubr.f32.gmra.mrb[0].mxu0 %v934
        %v1283 = vpop.f32.mrb[0].mxu0
        %v1284 = vadd.f32 0.0, %v1283
        %v1285 = vpop.f32.mrb[0].mxu0
        %1286 = vmatprep.mubr.f32.mxu0 0.0
        %1287 = vmatmul.mubr.f32.gmra.mrb[0].mxu0 %v936
        %v1288 = vpop.f32.mrb[0].mxu0
        %v1289 = vadd.f32 0.0, %v1288
        %v1290 = vpop.f32.mrb[0].mxu0
        %1291 = vmatprep.mubr.f32.mxu0 0.0
        %1292 = vmatmul.mubr.f32.gmra.mrb[0].mxu0 %v938
        %v1293 = vpop.f32.mrb[0].mxu0
        %v1294 = vadd.f32 0.0, %v1293
        %v1295 = vpop.f32.mrb[0].mxu0
        %1296 = vmatprep.mubr.f32.mxu0 0.0
        %1297 = vmatmul.mubr.f32.gmra.mrb[0].mxu0 %v940
        %v1298 = vpop.f32.mrb[0].mxu0
        %v1299 = vadd.f32 0.0, %v1298
        %v1300 = vpop.f32.mrb[0].mxu0
        %1301 = vmatprep.mubr.f32.mxu0 0.0
        %1302 = vmatmul.mubr.f32.gmra.mrb[0].mxu0 %v942
        %v1303 = vpop.f32.mrb[0].mxu0
        %v1304 = vadd.f32 0.0, %v1303
        %v1305 = vpop.f32.mrb[0].mxu0
        %1306 = vmatprep.mubr.f32.mxu0 0.0
        %1307 = vmatmul.mubr.f32.gmra.mrb[0].mxu0 %v944
        %v1308 = vpop.f32.mrb[0].mxu0
        %v1309 = vadd.f32 0.0, %v1308
        %v1310 = vpop.f32.mrb[0].mxu0
        %1311 = vmatprep.mubr.f32.mxu0 0.0
        %1312 = vmatmul.mubr.f32.gmra.mrb[0].mxu0 %v946
        %v1313 = vpop.f32.mrb[0].mxu0
        %v1314 = vadd.f32 0.0, %v1313
        %v1315 = vpop.f32.mrb[0].mxu0
        %1316 = vdwg.mxu0
        %v1317 = vadd.f32 %v1140, %v1239
        %v1318 = vadd.f32 %v1141, %v1244
        %v1319 = vadd.f32 %v1142, %v1249
        %v1320 = vadd.f32 %v1143, %v1254
        %v1321 = vadd.f32 %v1144, %v1259
        %v1322 = vadd.f32 %v1145, %v1264
        %v1323 = vadd.f32 %v1146, %v1269
        %v1324 = vadd.f32 %v1147, %v1274
        %v1325 = vadd.f32 %v1148, %v1279
        %v1326 = vadd.f32 %v1149, %v1284
        %v1327 = vadd.f32 %v1150, %v1289
        %v1328 = vadd.f32 %v1151, %v1294
        %v1329 = vadd.f32 %v1152, %v1299
        %v1330 = vadd.f32 %v1153, %v1304
        %v1331 = vadd.f32 %v1154, %v1309
        %v1332 = vadd.f32 %v1155, %v1314
        %1333 = vst [vmem:[#allocation4] sm:$0xff] %v1317
        %1334 = vst [vmem:[#allocation4 + $0x8] sm:$0xff] %v1318
        %1335 = vst [vmem:[#allocation4 + $0x10] sm:$0xff] %v1319
        %1336 = vst [vmem:[#allocation4 + $0x18] sm:$0xff] %v1320
        %1337 = vst [vmem:[#allocation4 + $0x20] sm:$0xff] %v1321
        %1338 = vst [vmem:[#allocation4 + $0x28] sm:$0xff] %v1322
        %1339 = vst [vmem:[#allocation4 + $0x30] sm:$0xff] %v1323
        %1340 = vst [vmem:[#allocation4 + $0x38] sm:$0xff] %v1324
        %1341 = vst [vmem:[#allocation4 + $0x40] sm:$0xff] %v1325
        %1342 = vst [vmem:[#allocation4 + $0x48] sm:$0xff] %v1326
        %1343 = vst [vmem:[#allocation4 + $0x50] sm:$0xff] %v1327
        %1344 = vst [vmem:[#allocation4 + $0x58] sm:$0xff] %v1328
        %1345 = vst [vmem:[#allocation4 + $0x60] sm:$0xff] %v1329
        %1346 = vst [vmem:[#allocation4 + $0x68] sm:$0xff] %v1330
        %1347 = vst [vmem:[#allocation4 + $0x70] sm:$0xff] %v1331
        %1348 = vst [vmem:[#allocation4 + $0x78] sm:$0xff] %v1332
        %1349 = vst.msk [vmem:[#allocation2] sm:$0xff] %vm1027, %v755
        %1350 = vst.msk [vmem:[#allocation2 + $0x8] sm:$0xff] %vm1027, %v756
        %1351 = vst.msk [vmem:[#allocation2 + $0x10] sm:$0xff] %vm1027, %v757
        %1352 = vst.msk [vmem:[#allocation2 + $0x18] sm:$0xff] %vm1027, %v758
        %1353 = vst.msk [vmem:[#allocation2 + $0x20] sm:$0xff] %vm1027, %v759
        %1354 = vst.msk [vmem:[#allocation2 + $0x28] sm:$0xff] %vm1027, %v760
        %1355 = vst.msk [vmem:[#allocation2 + $0x30] sm:$0xff] %vm1027, %v761
        %1356 = vst.msk [vmem:[#allocation2 + $0x38] sm:$0xff] %vm1027, %v762
        %1357 = vst.msk [vmem:[#allocation2 + $0x40] sm:$0xff] %vm1027, %v763
        %1358 = vst.msk [vmem:[#allocation2 + $0x48] sm:$0xff] %vm1027, %v764
        %1359 = vst.msk [vmem:[#allocation2 + $0x50] sm:$0xff] %vm1027, %v765
        %1360 = vst.msk [vmem:[#allocation2 + $0x58] sm:$0xff] %vm1027, %v766
        %1361 = vst.msk [vmem:[#allocation2 + $0x60] sm:$0xff] %vm1027, %v767
        %1362 = vst.msk [vmem:[#allocation2 + $0x68] sm:$0xff] %vm1027, %v768
        %1363 = vst.msk [vmem:[#allocation2 + $0x70] sm:$0xff] %vm1027, %v769
        %1364 = vst.msk [vmem:[#allocation2 + $0x78] sm:$0xff] %vm1027, %v770
        %p1365 = scmp.eq.s32.totalorder %s31, 1
        // Predicated region
        $region49: #{tpu_custom_call.1} parent=35 // pred_check
          %p1366 = pneg %p1365
        $region50: #{tpu_custom_call.1} parent=35 // pred_check_branch
          %1368 = sbr.rel (%p1366) target = $region52
        $region51: #{tpu_custom_call.1} parent=35 // pred_region
          %v1369 = vld [vmem:[#allocation3] sm:$0xff]
          %v1370 = vld [vmem:[#allocation3 + $0x8] sm:$0xff]
          %v1371 = vld [vmem:[#allocation3 + $0x10] sm:$0xff]
          %v1372 = vld [vmem:[#allocation3 + $0x18] sm:$0xff]
          %v1373 = vld [vmem:[#allocation3 + $0x20] sm:$0xff]
          %v1374 = vld [vmem:[#allocation3 + $0x28] sm:$0xff]
          %v1375 = vld [vmem:[#allocation3 + $0x30] sm:$0xff]
          %v1376 = vld [vmem:[#allocation3 + $0x38] sm:$0xff]
          %v1377 = vld [vmem:[#allocation3 + $0x40] sm:$0xff]
          %v1378 = vld [vmem:[#allocation3 + $0x48] sm:$0xff]
          %v1379 = vld [vmem:[#allocation3 + $0x50] sm:$0xff]
          %v1380 = vld [vmem:[#allocation3 + $0x58] sm:$0xff]
          %v1381 = vld [vmem:[#allocation3 + $0x60] sm:$0xff]
          %v1382 = vld [vmem:[#allocation3 + $0x68] sm:$0xff]
          %v1383 = vld [vmem:[#allocation3 + $0x70] sm:$0xff]
          %v1384 = vld [vmem:[#allocation3 + $0x78] sm:$0xff]
          %v1385 = vrcp.pop %v1369
          %v1386 = vrcp.pop %v1370
          %v1387 = vrcp.pop %v1371
          %v1388 = vrcp.pop %v1372
          %v1389 = vrcp.pop %v1373
          %v1390 = vrcp.pop %v1374
          %v1391 = vrcp.pop %v1375
          %v1392 = vrcp.pop %v1376
          %v1393 = vrcp.pop %v1377
          %v1394 = vrcp.pop %v1378
          %v1395 = vrcp.pop %v1379
          %v1396 = vrcp.pop %v1380
          %v1397 = vrcp.pop %v1381
          %v1398 = vrcp.pop %v1382
          %v1399 = vrcp.pop %v1383
          %v1400 = vrcp.pop %v1384
          %v1401 = vld [vmem:[#allocation4] sm:$0xff]
          %v1402 = vld [vmem:[#allocation4 + $0x8] sm:$0xff]
          %v1403 = vld [vmem:[#allocation4 + $0x10] sm:$0xff]
          %v1404 = vld [vmem:[#allocation4 + $0x18] sm:$0xff]
          %v1405 = vld [vmem:[#allocation4 + $0x20] sm:$0xff]
          %v1406 = vld [vmem:[#allocation4 + $0x28] sm:$0xff]
          %v1407 = vld [vmem:[#allocation4 + $0x30] sm:$0xff]
          %v1408 = vld [vmem:[#allocation4 + $0x38] sm:$0xff]
          %v1409 = vld [vmem:[#allocation4 + $0x40] sm:$0xff]
          %v1410 = vld [vmem:[#allocation4 + $0x48] sm:$0xff]
          %v1411 = vld [vmem:[#allocation4 + $0x50] sm:$0xff]
          %v1412 = vld [vmem:[#allocation4 + $0x58] sm:$0xff]
          %v1413 = vld [vmem:[#allocation4 + $0x60] sm:$0xff]
          %v1414 = vld [vmem:[#allocation4 + $0x68] sm:$0xff]
          %v1415 = vld [vmem:[#allocation4 + $0x70] sm:$0xff]
          %v1416 = vld [vmem:[#allocation4 + $0x78] sm:$0xff]
          %1418 = vset.pattern.permute.xlu0 0
          %1419 = vperm.xlu0 %1418, %v1385
          %v1420 = vpop.permute.xlu0 %1419
          %1423 = vset.pattern.permute.xlu0 0
          %1424 = vperm.xlu0 %1423, %v1386
          %v1425 = vpop.permute.xlu0 %1424
          %1428 = vset.pattern.permute.xlu0 0
          %1429 = vperm.xlu0 %1428, %v1387
          %v1430 = vpop.permute.xlu0 %1429
          %1433 = vset.pattern.permute.xlu0 0
          %1434 = vperm.xlu0 %1433, %v1388
          %v1435 = vpop.permute.xlu0 %1434
          %1438 = vset.pattern.permute.xlu0 0
          %1439 = vperm.xlu0 %1438, %v1389
          %v1440 = vpop.permute.xlu0 %1439
          %1443 = vset.pattern.permute.xlu0 0
          %1444 = vperm.xlu0 %1443, %v1390
          %v1445 = vpop.permute.xlu0 %1444
          %1448 = vset.pattern.permute.xlu0 0
          %1449 = vperm.xlu0 %1448, %v1391
          %v1450 = vpop.permute.xlu0 %1449
          %1453 = vset.pattern.permute.xlu0 0
          %1454 = vperm.xlu0 %1453, %v1392
          %v1455 = vpop.permute.xlu0 %1454
          %1458 = vset.pattern.permute.xlu0 0
          %1459 = vperm.xlu0 %1458, %v1393
          %v1460 = vpop.permute.xlu0 %1459
          %1463 = vset.pattern.permute.xlu0 0
          %1464 = vperm.xlu0 %1463, %v1394
          %v1465 = vpop.permute.xlu0 %1464
          %1468 = vset.pattern.permute.xlu0 0
          %1469 = vperm.xlu0 %1468, %v1395
          %v1470 = vpop.permute.xlu0 %1469
          %1473 = vset.pattern.permute.xlu0 0
          %1474 = vperm.xlu0 %1473, %v1396
          %v1475 = vpop.permute.xlu0 %1474
          %1478 = vset.pattern.permute.xlu0 0
          %1479 = vperm.xlu0 %1478, %v1397
          %v1480 = vpop.permute.xlu0 %1479
          %1483 = vset.pattern.permute.xlu0 0
          %1484 = vperm.xlu0 %1483, %v1398
          %v1485 = vpop.permute.xlu0 %1484
          %1488 = vset.pattern.permute.xlu0 0
          %1489 = vperm.xlu0 %1488, %v1399
          %v1490 = vpop.permute.xlu0 %1489
          %1493 = vset.pattern.permute.xlu0 0
          %1494 = vperm.xlu0 %1493, %v1400
          %v1495 = vpop.permute.xlu0 %1494
          %v1497 = vmul.f32 %v1401, %v1420
          %v1498 = vmul.f32 %v1402, %v1425
          %v1499 = vmul.f32 %v1403, %v1430
          %v1500 = vmul.f32 %v1404, %v1435
          %v1501 = vmul.f32 %v1405, %v1440
          %v1502 = vmul.f32 %v1406, %v1445
          %v1503 = vmul.f32 %v1407, %v1450
          %v1504 = vmul.f32 %v1408, %v1455
          %v1505 = vmul.f32 %v1409, %v1460
          %v1506 = vmul.f32 %v1410, %v1465
          %v1507 = vmul.f32 %v1411, %v1470
          %v1508 = vmul.f32 %v1412, %v1475
          %v1509 = vmul.f32 %v1413, %v1480
          %v1510 = vmul.f32 %v1414, %v1485
          %v1511 = vmul.f32 %v1415, %v1490
          %v1512 = vmul.f32 %v1416, %v1495
          %1513 = vst [vmem:[%s336] sm:$0xff] %v1497
          %1514 = vst [vmem:[%s336 + $0x8] sm:$0xff] %v1498
          %1515 = vst [vmem:[%s336 + $0x10] sm:$0xff] %v1499
          %1516 = vst [vmem:[%s336 + $0x18] sm:$0xff] %v1500
          %1517 = vst [vmem:[%s336 + $0x20] sm:$0xff] %v1501
          %1518 = vst [vmem:[%s336 + $0x28] sm:$0xff] %v1502
          %1519 = vst [vmem:[%s336 + $0x30] sm:$0xff] %v1503
          %1520 = vst [vmem:[%s336 + $0x38] sm:$0xff] %v1504
          %1521 = vst [vmem:[%s336 + $0x40] sm:$0xff] %v1505
          %1522 = vst [vmem:[%s336 + $0x48] sm:$0xff] %v1506
          %1523 = vst [vmem:[%s336 + $0x50] sm:$0xff] %v1507
          %1524 = vst [vmem:[%s336 + $0x58] sm:$0xff] %v1508
          %1525 = vst [vmem:[%s336 + $0x60] sm:$0xff] %v1509
          %1526 = vst [vmem:[%s336 + $0x68] sm:$0xff] %v1510
          %1527 = vst [vmem:[%s336 + $0x70] sm:$0xff] %v1511
          %1528 = vst [vmem:[%s336 + $0x78] sm:$0xff] %v1512
        $region52: #{tpu_custom_call.1} parent=35 // pred_fallthru
          _
        %s1529 = sand.u32 %s165, 1
        %s1530 = scalar_lea.sflag [#allocation7], %s1529
        %s1531 = sand.u32 %s165, 1
        %s1532 = smul.addr %s1531, 128
        %s1533 = scalar_lea.vmem [#allocation10], %s1532
        // Predicated region
        $region53: #{tpu_custom_call.1} parent=35 // pred_check
          %p1534 = pneg %p175
        $region54: #{tpu_custom_call.1} parent=35 // pred_check_branch
          %1536 = sbr.rel (%p1534) target = $region56
        $region55: #{tpu_custom_call.1} parent=35 // pred_region
          %s1537 = smul.u32 16, %s30
          %s1539 = ssub.s32 2048, 2048
          %1540 = vsyncadd %s1530, %s1539
          %s1541 = smul.addr %s29, 32
          %s1542 = sadd.s32 %s1537, %s1541
          %s1543 = smul.addr %s1542, 128
          %s1544 = scalar_lea.hbm %s4, %s1543
          %s1545 = sshll.u32 %s1533, 4
          %s1546 = int_to_ptr.vmem [resolvable:$true] %s1545
          %1551 = dma.vmem_to_hbm [thread:$0]  %s1546, 2048, %s1544, %s1530, 128, 128, 8
        $region56: #{tpu_custom_call.1} parent=35 // pred_fallthru
          _
      $region36: #{tpu_custom_call.1} parent=5 // pred_fallthru
        _
      %p1552 = scmp.le.s32.totalorder 2, %s19
      // Predicated region
      $region57: #{tpu_custom_call.1} parent=5 // pred_check
        %p1553 = pneg %p1552
      $region58: #{tpu_custom_call.1} parent=5 // pred_check_branch
        %1555 = sbr.rel (%p1553) target = $region60
      $region59: #{tpu_custom_call.1} parent=5 // pred_region
        %s1556 = ssub.s32 %s19, 2
        // Predicated region
        $region61: #{tpu_custom_call.1} parent=59 // pred_check
          %p1557 = pneg %p181
        $region62: #{tpu_custom_call.1} parent=59 // pred_check_branch
          %1559 = sbr.rel (%p1557) target = $region64
        $region63: #{tpu_custom_call.1} parent=59 // pred_region
          %s1560 = sand.u32 %s166, 1
          %s1561 = scalar_lea.sflag [#allocation7], %s1560
          %s1562 = sand.u32 %s166, 1
          %s1563 = smul.addr %s1562, 128
          %s1564 = scalar_lea.vmem [#allocation10], %s1563
          %1565 = dma.done %s1561, 2048
        $region64: #{tpu_custom_call.1} parent=59 // pred_fallthru
          _
      $region60: #{tpu_custom_call.1} parent=5 // pred_fallthru
        _
    $region6: #{tpu_custom_call.1} parent=1 // loop_footer
      %s23 = sadd.s32 1, %s19
    $region7: #{tpu_custom_call.1} parent=1 // loop_footer_branch
      %18 = sbr.rel target = $region3
    $region8: #{tpu_custom_call.1} parent=1 // loop_exit
      _
    %1566 = vsyncpa [#allocation6], 1
    %s1567 = scalar_lea.sflag [#allocation6], 1
    %1568 = vsyncpa %s1567, 1
    %1569 = vsyncpa [#allocation9], 1
    %s1570 = scalar_lea.sflag [#allocation9], 1
    %1571 = vsyncpa %s1570, 1
    %1572 = vsyncpa [#allocation7], 1
    %s1573 = scalar_lea.sflag [#allocation7], 1
    %1574 = vsyncpa %s1573, 1

</llo_original>
